<compile_context>
chip_gen: v7x
topology: tpu7x:2x2x1
jax: 0.10.0
libtpu: 0.0.40
codegen_flags: <defaults>
</compile_context>

<pallas_src>
import functools

import jax
import jax.numpy as jnp
from jax.experimental import pallas as pl
from jax.experimental.pallas import tpu as pltpu


def lstm_fc_kernel(x_ref, wih_t_ref, whh_t_ref, b_ref, wfc_hbm_ref, bfc_ref,
                   out_ref, wfc_vmem, dma_sem, *, seq_len, hidden_size):
    """Shapes:
      x_ref      : (T*Bp, D)  f32 VMEM   (pre-flattened in the wrapper)
      wih_t_ref  : (D, 4H)    f32 VMEM
      whh_t_ref  : (H, 4H)    f32 VMEM
      b_ref      : (1, 4H)    f32 VMEM   (b_ih + b_hh)
      wfc_hbm_ref: (T, H, O)  f32 ANY    (manually DMA'd, prefetched)
      bfc_ref    : (1, O)     f32 VMEM
      out_ref    : (Bp, O)    f32 VMEM
      wfc_vmem   : (T, H, O)  f32 VMEM scratch (DMA target)
      dma_sem    : DMA semaphore array (1,)
    """
    T = seq_len
    H = hidden_size
    Bp = x_ref.shape[0] // T
    O = wfc_vmem.shape[2]

    # ---- prefetch W_fc behind the recurrence --------------------------------
    wfc_copy = pltpu.make_async_copy(wfc_hbm_ref, wfc_vmem, dma_sem.at[0])
    wfc_copy.start()

    # ---- hoisted input projection: one MXU matmul for all timesteps ---------
    xproj = (jnp.dot(x_ref[...], wih_t_ref[...],
                     preferred_element_type=jnp.float32)
             + b_ref[...])                                          # (T*Bp, 4H)

    whh_t = whh_t_ref[...]                                          # (H, 4H)
    bfc = bfc_ref[...]                                              # (1, O)

    # Hoisted lane mask selecting the g-gate lanes of the (Bp, 4H) slab.
    lane = jax.lax.broadcasted_iota(jnp.int32, (Bp, 4 * H), 1)
    g_lanes = (lane >= 2 * H) & (lane < 3 * H)

    h = jnp.zeros((Bp, H), jnp.float32)
    c = jnp.zeros((Bp, H), jnp.float32)
    acc = jnp.zeros((Bp, O), jnp.float32) + bfc                     # fused FC acc

    # ---- fully unrolled recurrence (T static & small) ------------------------
    # TODO(synk): for T >~ 16-32 or big H switch to lax.fori_loop(unroll=2..4)
    # writing into a VMEM scratch slab to bound vreg live ranges.
    for t in range(T):
        gates = xproj[t * Bp:(t + 1) * Bp, :] + jnp.dot(
            h, whh_t, preferred_element_type=jnp.float32)           # (Bp, 4H)

        # Full-lane (4H = 128 lanes) nonlinearities: 2 EUP slabs instead of
        # 4 narrow 32-lane ops; g-gate lanes picked with a cheap VPU select.
        sig = jax.nn.sigmoid(gates)
        tnh = jnp.tanh(gates)
        act = jnp.where(g_lanes, tnh, sig)                          # [i, f, g, o]

        i_g = act[:, 0 * H:1 * H]
        f_g = act[:, 1 * H:2 * H]
        g_g = act[:, 2 * H:3 * H]
        o_g = act[:, 3 * H:4 * H]
        c = f_g * c + i_g * g_g
        h = o_g * jnp.tanh(c)

        if t == 0:
            # First use of W_fc: by now its DMA has been hidden behind the
            # input projection and the step-0 recurrent matmul / gate math.
            wfc_copy.wait()

        # Fused FC head: no lane-concatenate, no epilogue matmul; off the
        # serial h/c chain so it hides under the recurrence.
        acc = acc + jnp.dot(h, wfc_vmem[t],
                            preferred_element_type=jnp.float32)     # (Bp, O)

    out_ref[...] = acc


def _padded_bytes(shape, itemsize=4):
    """Bytes of an f32 array once its trailing dims are (8, 128)-tile padded."""
    shape = tuple(shape)
    if len(shape) == 1:
        shape = (1,) + shape
    lead = 1
    for d in shape[:-2]:
        lead *= int(d)
    r, c = int(shape[-2]), int(shape[-1])
    rp = ((r + 7) // 8) * 8
    cp = ((c + 127) // 128) * 128
    return lead * rp * cp * itemsize


def vanilla_lstm_forward(x, params):
    """x: (B, T, D) float32 (PyTorch batch_first). Returns (B, steps*output_size)."""
    w_ih, w_hh, b_ih, b_hh, w_fc, b_fc = params
    B, T, D = x.shape
    H = w_hh.shape[1]
    O = w_fc.shape[0]
    assert w_fc.shape[1] == T * H

    # Pad batch to the 8-sublane vreg height so VPU/MXU rows aren't 4x padded.
    # TODO(synk): for production batch sizes add a "parallel" batch grid axis
    # (fills the 256-row MXU on v6e/v7x and uses both v7x TensorCores).
    Bp = ((B + 7) // 8) * 8
    x_tm = jnp.transpose(x, (1, 0, 2)).astype(jnp.float32)          # (T, B, D)
    if Bp != B:
        x_tm = jnp.pad(x_tm, ((0, 0), (0, Bp - B), (0, 0)))
    x_flat = x_tm.reshape(T * Bp, D)                                # wrapper-side flatten

    # Wrapper-side weight prep (keeps all relayout out of the kernel).
    wih_t = w_ih.T.astype(jnp.float32)                              # (D, 4H)
    whh_t = w_hh.T.astype(jnp.float32)                              # (H, 4H)
    b = (b_ih + b_hh)[None, :].astype(jnp.float32)                  # (1, 4H)
    wfc_tho = w_fc.T.reshape(T, H, O).astype(jnp.float32)           # (T, H, O)
    bfc = b_fc[None, :].astype(jnp.float32)                         # (1, O)

    kernel = functools.partial(lstm_fc_kernel, seq_len=T, hidden_size=H)

    flops = (2 * T * Bp * D * 4 * H          # input projection
             + 2 * T * Bp * H * 4 * H        # recurrent matmuls
             + 2 * T * Bp * H * O)           # fused FC head
    transcendentals = 9 * T * Bp * H         # 2 full-slab EUP ops + tanh(c) / step
    bytes_accessed = 4 * (T * Bp * D + D * 4 * H + H * 4 * H + 4 * H
                          + T * H * O + O + Bp * O)

    # Re-derived VMEM budget from actual padded footprints (incl. xproj slab),
    # with headroom, clamped well under v7x's 64 MiB physical VMEM.
    resident = (_padded_bytes((T * Bp, D)) + _padded_bytes((D, 4 * H))
                + _padded_bytes((H, 4 * H)) + _padded_bytes((1, 4 * H))
                + _padded_bytes((T, H, O)) + _padded_bytes((1, O))
                + _padded_bytes((Bp, O)) + _padded_bytes((T * Bp, 4 * H)))
    vmem_limit = int(min(48 << 20, max(4 << 20, 4 * resident)))

    vmem_spec = pl.BlockSpec(memory_space=pltpu.MemorySpace.VMEM)

    out = pl.pallas_call(
        kernel,
        out_shape=jax.ShapeDtypeStruct((Bp, O), jnp.float32),
        in_specs=[vmem_spec,                           # x_flat
                  vmem_spec,                           # W_ih^T
                  vmem_spec,                           # W_hh^T
                  vmem_spec,                           # combined LSTM bias
                  pl.BlockSpec(memory_space=pl.ANY),   # W_fc (manual DMA prefetch)
                  vmem_spec],                          # fc bias
        out_specs=vmem_spec,
        scratch_shapes=[pltpu.VMEM((T, H, O), jnp.float32),
                        pltpu.SemaphoreType.DMA((1,))],
        compiler_params=pltpu.CompilerParams(vmem_limit_bytes=vmem_limit),
        cost_estimate=pl.CostEstimate(flops=flops,
                                      transcendentals=transcendentals,
                                      bytes_accessed=bytes_accessed),
    )(x_flat, wih_t, whh_t, b, wfc_tho, bfc)
    return out[:B]


# ----------------------- parameter init (deterministic) -----------------------
def _orthogonal(key, shape):
    a = jax.random.normal(key, shape, dtype=jnp.float32)
    if shape[0] >= shape[1]:
        q, r = jnp.linalg.qr(a)
    else:
        q, r = jnp.linalg.qr(a.T)
        q = q.T
    d = jnp.sign(jnp.diagonal(r))
    d = jnp.where(d == 0, 1.0, d)
    if shape[0] >= shape[1]:
        q = q * d[None, :]
    else:
        q = q * d[:, None]
    return q.astype(jnp.float32)


def _kaiming_normal(key, shape):
    fan_in = shape[1]
    std = (2.0 / fan_in) ** 0.5
    return std * jax.random.normal(key, shape, dtype=jnp.float32)


def init_params(key, input_size, seq_length, hidden_size, steps, output_size):
    k1, k2, k3 = jax.random.split(key, 3)
    H, D, T = hidden_size, input_size, seq_length
    O = steps * output_size
    w_ih = _orthogonal(k1, (4 * H, D))           # nn.LSTM weight_ih_l0 (orthogonal)
    w_hh = _orthogonal(k2, (4 * H, H))           # nn.LSTM weight_hh_l0 (orthogonal)
    b_ih = jnp.zeros((4 * H,), jnp.float32)      # constant 0
    b_hh = jnp.zeros((4 * H,), jnp.float32)      # constant 0
    w_fc = _kaiming_normal(k3, (O, T * H))       # fc weight (kaiming_normal)
    b_fc = jnp.zeros((O,), jnp.float32)          # constant 0
    return (w_ih, w_hh, b_ih, b_hh, w_fc, b_fc)


# ----------------------------- pure-JAX reference -----------------------------
def reference_forward(x, params):
    w_ih, w_hh, b_ih, b_hh, w_fc, b_fc = params
    B, T, D = x.shape
    H = w_hh.shape[1]
    h = jnp.zeros((B, H), jnp.float32)
    c = jnp.zeros((B, H), jnp.float32)
    hs = []
    for t in range(T):
        g = x[:, t, :] @ w_ih.T + b_ih + h @ w_hh.T + b_hh
        i = jax.nn.sigmoid(g[:, 0 * H:1 * H])
        f = jax.nn.sigmoid(g[:, 1 * H:2 * H])
        gg = jnp.tanh(g[:, 2 * H:3 * H])
        o = jax.nn.sigmoid(g[:, 3 * H:4 * H])
        c = f * c + i * gg
        h = o * jnp.tanh(c)
        hs.append(h)
    flat = jnp.stack(hs, axis=1).reshape(B, T * H)
    return flat @ w_fc.T + b_fc


if __name__ == "__main__":
    B, T, D, H = 2, 8, 4, 32
    steps, output_size = 1, 1

    key = jax.random.PRNGKey(0)
    kx, kp = jax.random.split(key)
    x = jax.random.normal(kx, (B, T, D), dtype=jnp.float32)
    params = init_params(kp, input_size=D, seq_length=T, hidden_size=H,
                         steps=steps, output_size=output_size)

    out = vanilla_lstm_forward(x, params)
    out = jax.block_until_ready(out)

    ref = reference_forward(x, params)
    assert out.shape == (B, steps * output_size)
    assert jnp.allclose(out, ref, rtol=1e-4, atol=1e-4), (out, ref)

    print("KERNEL_OK")
</pallas_src>

<mosaic_0001>
module attributes {stable_mosaic.version = 11 : i64} {
  func.func @lstm_fc_kernel(%arg0: memref<64x4xf32, #tpu.memory_space<vmem>>, %arg1: memref<4x128xf32, #tpu.memory_space<vmem>>, %arg2: memref<32x128xf32, #tpu.memory_space<vmem>>, %arg3: memref<1x128xf32, #tpu.memory_space<vmem>>, %arg4: memref<8x32x1xf32, #tpu.memory_space<any>>, %arg5: memref<1x1xf32, #tpu.memory_space<vmem>>, %arg6: memref<8x1xf32, #tpu.memory_space<vmem>>, %arg7: memref<8x32x1xf32, #tpu.memory_space<vmem>>, %arg8: memref<1x!tpu.dma_semaphore, #tpu.memory_space<semaphore_mem>>) attributes {dimension_semantics = [], scalar_prefetch = 0 : i64, scratch_operands = 2 : i64, tpu.core_type = #tpu.core_type<tc>} {
    %c0_i32 = arith.constant 0 : i32
    %0 = tpu.memref_slice %arg8[%c0_i32] : memref<1x!tpu.dma_semaphore, #tpu.memory_space<semaphore_mem>> -> memref<1x!tpu.dma_semaphore, #tpu.memory_space<semaphore_mem>>
    %1 = tpu.memref_squeeze %0 : memref<1x!tpu.dma_semaphore, #tpu.memory_space<semaphore_mem>> -> memref<!tpu.dma_semaphore, #tpu.memory_space<semaphore_mem>>
    tpu.enqueue_dma source(%arg4 : memref<8x32x1xf32, #tpu.memory_space<any>>) target(%arg7 : memref<8x32x1xf32, #tpu.memory_space<vmem>>) target_semaphore(%1 : memref<!tpu.dma_semaphore, #tpu.memory_space<semaphore_mem>>)
    %c0 = arith.constant 0 : index
    %c0_0 = arith.constant 0 : index
    %2 = vector.load %arg0[%c0, %c0_0] : memref<64x4xf32, #tpu.memory_space<vmem>>, vector<64x4xf32>
    %c0_1 = arith.constant 0 : index
    %c0_2 = arith.constant 0 : index
    %3 = vector.load %arg1[%c0_1, %c0_2] : memref<4x128xf32, #tpu.memory_space<vmem>>, vector<4x128xf32>
    %cst = arith.constant dense<0.000000e+00> : vector<64x128xf32>
    %4 = tpu.matmul %2, %3, %cst {dimension_numbers = #tpu.dot_dimension_numbers<[1], [0], [0], [1], [0, 0, 1, 1], [], []>} : vector<64x4xf32>, vector<4x128xf32>, vector<64x128xf32> -> vector<64x128xf32>
    %c0_3 = arith.constant 0 : index
    %c0_4 = arith.constant 0 : index
    %5 = vector.load %arg3[%c0_3, %c0_4] : memref<1x128xf32, #tpu.memory_space<vmem>>, vector<1x128xf32>
    %6 = vector.broadcast %5 : vector<1x128xf32> to vector<64x128xf32>
    %7 = arith.addf %4, %6 : vector<64x128xf32>
    %c0_5 = arith.constant 0 : index
    %c0_6 = arith.constant 0 : index
    %8 = vector.load %arg2[%c0_5, %c0_6] : memref<32x128xf32, #tpu.memory_space<vmem>>, vector<32x128xf32>
    %c0_7 = arith.constant 0 : index
    %c0_8 = arith.constant 0 : index
    %9 = vector.load %arg5[%c0_7, %c0_8] : memref<1x1xf32, #tpu.memory_space<vmem>>, vector<1x1xf32>
    %10 = tpu.iota {dimensions = array<i32: 1>} : vector<8x128xi32>
    %c64_i32 = arith.constant 64 : i32
    %11 = vector.broadcast %c64_i32 : i32 to vector<8x128xi32>
    %12 = arith.cmpi sge, %10, %11 : vector<8x128xi32>
    %c96_i32 = arith.constant 96 : i32
    %13 = vector.broadcast %c96_i32 : i32 to vector<8x128xi32>
    %14 = arith.cmpi slt, %10, %13 : vector<8x128xi32>
    %15 = arith.andi %12, %14 : vector<8x128xi1>
    %cst_9 = arith.constant 0.000000e+00 : f32
    %16 = vector.broadcast %cst_9 : f32 to vector<8x32xf32>
    %cst_10 = arith.constant 0.000000e+00 : f32
    %17 = vector.broadcast %cst_10 : f32 to vector<8x32xf32>
    %cst_11 = arith.constant 0.000000e+00 : f32
    %18 = vector.broadcast %cst_11 : f32 to vector<8x1xf32>
    %19 = vector.broadcast %9 : vector<1x1xf32> to vector<8x1xf32>
    %20 = arith.addf %18, %19 : vector<8x1xf32>
    %21 = vector.extract_strided_slice %7 {offsets = [0, 0], sizes = [8, 128], strides = [1, 1]} : vector<64x128xf32> to vector<8x128xf32>
    %cst_12 = arith.constant dense<0.000000e+00> : vector<8x128xf32>
    %22 = tpu.matmul %16, %8, %cst_12 {dimension_numbers = #tpu.dot_dimension_numbers<[1], [0], [0], [1], [0, 0, 1, 1], [], []>} : vector<8x32xf32>, vector<32x128xf32>, vector<8x128xf32> -> vector<8x128xf32>
    %23 = arith.addf %21, %22 : vector<8x128xf32>
    %24 = arith.negf %23 : vector<8x128xf32>
    %25 = math.exp %24 : vector<8x128xf32>
    %cst_13 = arith.constant 1.000000e+00 : f32
    %26 = vector.broadcast %cst_13 : f32 to vector<8x128xf32>
    %27 = arith.addf %26, %25 : vector<8x128xf32>
    %28 = arith.divf %26, %27 : vector<8x128xf32>
    %29 = math.tanh %23 : vector<8x128xf32>
    %30 = arith.select %15, %29, %28 : vector<8x128xi1>, vector<8x128xf32>
    %31 = vector.extract_strided_slice %30 {offsets = [0, 0], sizes = [8, 32], strides = [1, 1]} : vector<8x128xf32> to vector<8x32xf32>
    %32 = vector.extract_strided_slice %30 {offsets = [0, 32], sizes = [8, 32], strides = [1, 1]} : vector<8x128xf32> to vector<8x32xf32>
    %33 = vector.extract_strided_slice %30 {offsets = [0, 64], sizes = [8, 32], strides = [1, 1]} : vector<8x128xf32> to vector<8x32xf32>
    %34 = vector.extract_strided_slice %30 {offsets = [0, 96], sizes = [8, 32], strides = [1, 1]} : vector<8x128xf32> to vector<8x32xf32>
    %35 = arith.mulf %32, %17 : vector<8x32xf32>
    %36 = arith.mulf %31, %33 : vector<8x32xf32>
    %37 = arith.addf %35, %36 : vector<8x32xf32>
    %38 = math.tanh %37 : vector<8x32xf32>
    %39 = arith.mulf %34, %38 : vector<8x32xf32>
    %c0_i32_14 = arith.constant 0 : i32
    %40 = tpu.memref_slice %arg8[%c0_i32_14] : memref<1x!tpu.dma_semaphore, #tpu.memory_space<semaphore_mem>> -> memref<1x!tpu.dma_semaphore, #tpu.memory_space<semaphore_mem>>
    %41 = tpu.memref_squeeze %40 : memref<1x!tpu.dma_semaphore, #tpu.memory_space<semaphore_mem>> -> memref<!tpu.dma_semaphore, #tpu.memory_space<semaphore_mem>>
    tpu.wait_dma2 semaphore(%41 : memref<!tpu.dma_semaphore, #tpu.memory_space<semaphore_mem>>) src(%arg4 : memref<8x32x1xf32, #tpu.memory_space<any>>) dst(%arg7 : memref<8x32x1xf32, #tpu.memory_space<vmem>>)
    %c0_15 = arith.constant 0 : index
    %c0_16 = arith.constant 0 : index
    %c0_17 = arith.constant 0 : index
    %42 = vector.load %arg7[%c0_15, %c0_16, %c0_17] : memref<8x32x1xf32, #tpu.memory_space<vmem>>, vector<1x32x1xf32>
    %43 = vector.shape_cast %42 : vector<1x32x1xf32> to vector<32x1xf32>
    %cst_18 = arith.constant dense<0.000000e+00> : vector<8x1xf32>
    %44 = tpu.matmul %39, %43, %cst_18 {dimension_numbers = #tpu.dot_dimension_numbers<[1], [0], [0], [1], [0, 0, 1, 1], [], []>} : vector<8x32xf32>, vector<32x1xf32>, vector<8x1xf32> -> vector<8x1xf32>
    %45 = arith.addf %20, %44 : vector<8x1xf32>
    %46 = vector.extract_strided_slice %7 {offsets = [8, 0], sizes = [8, 128], strides = [1, 1]} : vector<64x128xf32> to vector<8x128xf32>
    %cst_19 = arith.constant dense<0.000000e+00> : vector<8x128xf32>
    %47 = tpu.matmul %39, %8, %cst_19 {dimension_numbers = #tpu.dot_dimension_numbers<[1], [0], [0], [1], [0, 0, 1, 1], [], []>} : vector<8x32xf32>, vector<32x128xf32>, vector<8x128xf32> -> vector<8x128xf32>
    %48 = arith.addf %46, %47 : vector<8x128xf32>
    %49 = arith.negf %48 : vector<8x128xf32>
    %50 = math.exp %49 : vector<8x128xf32>
    %cst_20 = arith.constant 1.000000e+00 : f32
    %51 = vector.broadcast %cst_20 : f32 to vector<8x128xf32>
    %52 = arith.addf %51, %50 : vector<8x128xf32>
    %53 = arith.divf %51, %52 : vector<8x128xf32>
    %54 = math.tanh %48 : vector<8x128xf32>
    %55 = arith.select %15, %54, %53 : vector<8x128xi1>, vector<8x128xf32>
    %56 = vector.extract_strided_slice %55 {offsets = [0, 0], sizes = [8, 32], strides = [1, 1]} : vector<8x128xf32> to vector<8x32xf32>
    %57 = vector.extract_strided_slice %55 {offsets = [0, 32], sizes = [8, 32], strides = [1, 1]} : vector<8x128xf32> to vector<8x32xf32>
    %58 = vector.extract_strided_slice %55 {offsets = [0, 64], sizes = [8, 32], strides = [1, 1]} : vector<8x128xf32> to vector<8x32xf32>
    %59 = vector.extract_strided_slice %55 {offsets = [0, 96], sizes = [8, 32], strides = [1, 1]} : vector<8x128xf32> to vector<8x32xf32>
    %60 = arith.mulf %57, %37 : vector<8x32xf32>
    %61 = arith.mulf %56, %58 : vector<8x32xf32>
    %62 = arith.addf %60, %61 : vector<8x32xf32>
    %63 = math.tanh %62 : vector<8x32xf32>
    %64 = arith.mulf %59, %63 : vector<8x32xf32>
    %c1 = arith.constant 1 : index
    %c0_21 = arith.constant 0 : index
    %c0_22 = arith.constant 0 : index
    %65 = vector.load %arg7[%c1, %c0_21, %c0_22] : memref<8x32x1xf32, #tpu.memory_space<vmem>>, vector<1x32x1xf32>
    %66 = vector.shape_cast %65 : vector<1x32x1xf32> to vector<32x1xf32>
    %cst_23 = arith.constant dense<0.000000e+00> : vector<8x1xf32>
    %67 = tpu.matmul %64, %66, %cst_23 {dimension_numbers = #tpu.dot_dimension_numbers<[1], [0], [0], [1], [0, 0, 1, 1], [], []>} : vector<8x32xf32>, vector<32x1xf32>, vector<8x1xf32> -> vector<8x1xf32>
    %68 = arith.addf %45, %67 : vector<8x1xf32>
    %69 = vector.extract_strided_slice %7 {offsets = [16, 0], sizes = [8, 128], strides = [1, 1]} : vector<64x128xf32> to vector<8x128xf32>
    %cst_24 = arith.constant dense<0.000000e+00> : vector<8x128xf32>
    %70 = tpu.matmul %64, %8, %cst_24 {dimension_numbers = #tpu.dot_dimension_numbers<[1], [0], [0], [1], [0, 0, 1, 1], [], []>} : vector<8x32xf32>, vector<32x128xf32>, vector<8x128xf32> -> vector<8x128xf32>
    %71 = arith.addf %69, %70 : vector<8x128xf32>
    %72 = arith.negf %71 : vector<8x128xf32>
    %73 = math.exp %72 : vector<8x128xf32>
    %cst_25 = arith.constant 1.000000e+00 : f32
    %74 = vector.broadcast %cst_25 : f32 to vector<8x128xf32>
    %75 = arith.addf %74, %73 : vector<8x128xf32>
    %76 = arith.divf %74, %75 : vector<8x128xf32>
    %77 = math.tanh %71 : vector<8x128xf32>
    %78 = arith.select %15, %77, %76 : vector<8x128xi1>, vector<8x128xf32>
    %79 = vector.extract_strided_slice %78 {offsets = [0, 0], sizes = [8, 32], strides = [1, 1]} : vector<8x128xf32> to vector<8x32xf32>
    %80 = vector.extract_strided_slice %78 {offsets = [0, 32], sizes = [8, 32], strides = [1, 1]} : vector<8x128xf32> to vector<8x32xf32>
    %81 = vector.extract_strided_slice %78 {offsets = [0, 64], sizes = [8, 32], strides = [1, 1]} : vector<8x128xf32> to vector<8x32xf32>
    %82 = vector.extract_strided_slice %78 {offsets = [0, 96], sizes = [8, 32], strides = [1, 1]} : vector<8x128xf32> to vector<8x32xf32>
    %83 = arith.mulf %80, %62 : vector<8x32xf32>
    %84 = arith.mulf %79, %81 : vector<8x32xf32>
    %85 = arith.addf %83, %84 : vector<8x32xf32>
    %86 = math.tanh %85 : vector<8x32xf32>
    %87 = arith.mulf %82, %86 : vector<8x32xf32>
    %c2 = arith.constant 2 : index
    %c0_26 = arith.constant 0 : index
    %c0_27 = arith.constant 0 : index
    %88 = vector.load %arg7[%c2, %c0_26, %c0_27] : memref<8x32x1xf32, #tpu.memory_space<vmem>>, vector<1x32x1xf32>
    %89 = vector.shape_cast %88 : vector<1x32x1xf32> to vector<32x1xf32>
    %cst_28 = arith.constant dense<0.000000e+00> : vector<8x1xf32>
    %90 = tpu.matmul %87, %89, %cst_28 {dimension_numbers = #tpu.dot_dimension_numbers<[1], [0], [0], [1], [0, 0, 1, 1], [], []>} : vector<8x32xf32>, vector<32x1xf32>, vector<8x1xf32> -> vector<8x1xf32>
    %91 = arith.addf %68, %90 : vector<8x1xf32>
    %92 = vector.extract_strided_slice %7 {offsets = [24, 0], sizes = [8, 128], strides = [1, 1]} : vector<64x128xf32> to vector<8x128xf32>
    %cst_29 = arith.constant dense<0.000000e+00> : vector<8x128xf32>
    %93 = tpu.matmul %87, %8, %cst_29 {dimension_numbers = #tpu.dot_dimension_numbers<[1], [0], [0], [1], [0, 0, 1, 1], [], []>} : vector<8x32xf32>, vector<32x128xf32>, vector<8x128xf32> -> vector<8x128xf32>
    %94 = arith.addf %92, %93 : vector<8x128xf32>
    %95 = arith.negf %94 : vector<8x128xf32>
    %96 = math.exp %95 : vector<8x128xf32>
    %cst_30 = arith.constant 1.000000e+00 : f32
    %97 = vector.broadcast %cst_30 : f32 to vector<8x128xf32>
    %98 = arith.addf %97, %96 : vector<8x128xf32>
    %99 = arith.divf %97, %98 : vector<8x128xf32>
    %100 = math.tanh %94 : vector<8x128xf32>
    %101 = arith.select %15, %100, %99 : vector<8x128xi1>, vector<8x128xf32>
    %102 = vector.extract_strided_slice %101 {offsets = [0, 0], sizes = [8, 32], strides = [1, 1]} : vector<8x128xf32> to vector<8x32xf32>
    %103 = vector.extract_strided_slice %101 {offsets = [0, 32], sizes = [8, 32], strides = [1, 1]} : vector<8x128xf32> to vector<8x32xf32>
    %104 = vector.extract_strided_slice %101 {offsets = [0, 64], sizes = [8, 32], strides = [1, 1]} : vector<8x128xf32> to vector<8x32xf32>
    %105 = vector.extract_strided_slice %101 {offsets = [0, 96], sizes = [8, 32], strides = [1, 1]} : vector<8x128xf32> to vector<8x32xf32>
    %106 = arith.mulf %103, %85 : vector<8x32xf32>
    %107 = arith.mulf %102, %104 : vector<8x32xf32>
    %108 = arith.addf %106, %107 : vector<8x32xf32>
    %109 = math.tanh %108 : vector<8x32xf32>
    %110 = arith.mulf %105, %109 : vector<8x32xf32>
    %c3 = arith.constant 3 : index
    %c0_31 = arith.constant 0 : index
    %c0_32 = arith.constant 0 : index
    %111 = vector.load %arg7[%c3, %c0_31, %c0_32] : memref<8x32x1xf32, #tpu.memory_space<vmem>>, vector<1x32x1xf32>
    %112 = vector.shape_cast %111 : vector<1x32x1xf32> to vector<32x1xf32>
    %cst_33 = arith.constant dense<0.000000e+00> : vector<8x1xf32>
    %113 = tpu.matmul %110, %112, %cst_33 {dimension_numbers = #tpu.dot_dimension_numbers<[1], [0], [0], [1], [0, 0, 1, 1], [], []>} : vector<8x32xf32>, vector<32x1xf32>, vector<8x1xf32> -> vector<8x1xf32>
    %114 = arith.addf %91, %113 : vector<8x1xf32>
    %115 = vector.extract_strided_slice %7 {offsets = [32, 0], sizes = [8, 128], strides = [1, 1]} : vector<64x128xf32> to vector<8x128xf32>
    %cst_34 = arith.constant dense<0.000000e+00> : vector<8x128xf32>
    %116 = tpu.matmul %110, %8, %cst_34 {dimension_numbers = #tpu.dot_dimension_numbers<[1], [0], [0], [1], [0, 0, 1, 1], [], []>} : vector<8x32xf32>, vector<32x128xf32>, vector<8x128xf32> -> vector<8x128xf32>
    %117 = arith.addf %115, %116 : vector<8x128xf32>
    %118 = arith.negf %117 : vector<8x128xf32>
    %119 = math.exp %118 : vector<8x128xf32>
    %cst_35 = arith.constant 1.000000e+00 : f32
    %120 = vector.broadcast %cst_35 : f32 to vector<8x128xf32>
    %121 = arith.addf %120, %119 : vector<8x128xf32>
    %122 = arith.divf %120, %121 : vector<8x128xf32>
    %123 = math.tanh %117 : vector<8x128xf32>
    %124 = arith.select %15, %123, %122 : vector<8x128xi1>, vector<8x128xf32>
    %125 = vector.extract_strided_slice %124 {offsets = [0, 0], sizes = [8, 32], strides = [1, 1]} : vector<8x128xf32> to vector<8x32xf32>
    %126 = vector.extract_strided_slice %124 {offsets = [0, 32], sizes = [8, 32], strides = [1, 1]} : vector<8x128xf32> to vector<8x32xf32>
    %127 = vector.extract_strided_slice %124 {offsets = [0, 64], sizes = [8, 32], strides = [1, 1]} : vector<8x128xf32> to vector<8x32xf32>
    %128 = vector.extract_strided_slice %124 {offsets = [0, 96], sizes = [8, 32], strides = [1, 1]} : vector<8x128xf32> to vector<8x32xf32>
    %129 = arith.mulf %126, %108 : vector<8x32xf32>
    %130 = arith.mulf %125, %127 : vector<8x32xf32>
    %131 = arith.addf %129, %130 : vector<8x32xf32>
    %132 = math.tanh %131 : vector<8x32xf32>
    %133 = arith.mulf %128, %132 : vector<8x32xf32>
    %c4 = arith.constant 4 : index
    %c0_36 = arith.constant 0 : index
    %c0_37 = arith.constant 0 : index
    %134 = vector.load %arg7[%c4, %c0_36, %c0_37] : memref<8x32x1xf32, #tpu.memory_space<vmem>>, vector<1x32x1xf32>
    %135 = vector.shape_cast %134 : vector<1x32x1xf32> to vector<32x1xf32>
    %cst_38 = arith.constant dense<0.000000e+00> : vector<8x1xf32>
    %136 = tpu.matmul %133, %135, %cst_38 {dimension_numbers = #tpu.dot_dimension_numbers<[1], [0], [0], [1], [0, 0, 1, 1], [], []>} : vector<8x32xf32>, vector<32x1xf32>, vector<8x1xf32> -> vector<8x1xf32>
    %137 = arith.addf %114, %136 : vector<8x1xf32>
    %138 = vector.extract_strided_slice %7 {offsets = [40, 0], sizes = [8, 128], strides = [1, 1]} : vector<64x128xf32> to vector<8x128xf32>
    %cst_39 = arith.constant dense<0.000000e+00> : vector<8x128xf32>
    %139 = tpu.matmul %133, %8, %cst_39 {dimension_numbers = #tpu.dot_dimension_numbers<[1], [0], [0], [1], [0, 0, 1, 1], [], []>} : vector<8x32xf32>, vector<32x128xf32>, vector<8x128xf32> -> vector<8x128xf32>
    %140 = arith.addf %138, %139 : vector<8x128xf32>
    %141 = arith.negf %140 : vector<8x128xf32>
    %142 = math.exp %141 : vector<8x128xf32>
    %cst_40 = arith.constant 1.000000e+00 : f32
    %143 = vector.broadcast %cst_40 : f32 to vector<8x128xf32>
    %144 = arith.addf %143, %142 : vector<8x128xf32>
    %145 = arith.divf %143, %144 : vector<8x128xf32>
    %146 = math.tanh %140 : vector<8x128xf32>
    %147 = arith.select %15, %146, %145 : vector<8x128xi1>, vector<8x128xf32>
    %148 = vector.extract_strided_slice %147 {offsets = [0, 0], sizes = [8, 32], strides = [1, 1]} : vector<8x128xf32> to vector<8x32xf32>
    %149 = vector.extract_strided_slice %147 {offsets = [0, 32], sizes = [8, 32], strides = [1, 1]} : vector<8x128xf32> to vector<8x32xf32>
    %150 = vector.extract_strided_slice %147 {offsets = [0, 64], sizes = [8, 32], strides = [1, 1]} : vector<8x128xf32> to vector<8x32xf32>
    %151 = vector.extract_strided_slice %147 {offsets = [0, 96], sizes = [8, 32], strides = [1, 1]} : vector<8x128xf32> to vector<8x32xf32>
    %152 = arith.mulf %149, %131 : vector<8x32xf32>
    %153 = arith.mulf %148, %150 : vector<8x32xf32>
    %154 = arith.addf %152, %153 : vector<8x32xf32>
    %155 = math.tanh %154 : vector<8x32xf32>
    %156 = arith.mulf %151, %155 : vector<8x32xf32>
    %c5 = arith.constant 5 : index
    %c0_41 = arith.constant 0 : index
    %c0_42 = arith.constant 0 : index
    %157 = vector.load %arg7[%c5, %c0_41, %c0_42] : memref<8x32x1xf32, #tpu.memory_space<vmem>>, vector<1x32x1xf32>
    %158 = vector.shape_cast %157 : vector<1x32x1xf32> to vector<32x1xf32>
    %cst_43 = arith.constant dense<0.000000e+00> : vector<8x1xf32>
    %159 = tpu.matmul %156, %158, %cst_43 {dimension_numbers = #tpu.dot_dimension_numbers<[1], [0], [0], [1], [0, 0, 1, 1], [], []>} : vector<8x32xf32>, vector<32x1xf32>, vector<8x1xf32> -> vector<8x1xf32>
    %160 = arith.addf %137, %159 : vector<8x1xf32>
    %161 = vector.extract_strided_slice %7 {offsets = [48, 0], sizes = [8, 128], strides = [1, 1]} : vector<64x128xf32> to vector<8x128xf32>
    %cst_44 = arith.constant dense<0.000000e+00> : vector<8x128xf32>
    %162 = tpu.matmul %156, %8, %cst_44 {dimension_numbers = #tpu.dot_dimension_numbers<[1], [0], [0], [1], [0, 0, 1, 1], [], []>} : vector<8x32xf32>, vector<32x128xf32>, vector<8x128xf32> -> vector<8x128xf32>
    %163 = arith.addf %161, %162 : vector<8x128xf32>
    %164 = arith.negf %163 : vector<8x128xf32>
    %165 = math.exp %164 : vector<8x128xf32>
    %cst_45 = arith.constant 1.000000e+00 : f32
    %166 = vector.broadcast %cst_45 : f32 to vector<8x128xf32>
    %167 = arith.addf %166, %165 : vector<8x128xf32>
    %168 = arith.divf %166, %167 : vector<8x128xf32>
    %169 = math.tanh %163 : vector<8x128xf32>
    %170 = arith.select %15, %169, %168 : vector<8x128xi1>, vector<8x128xf32>
    %171 = vector.extract_strided_slice %170 {offsets = [0, 0], sizes = [8, 32], strides = [1, 1]} : vector<8x128xf32> to vector<8x32xf32>
    %172 = vector.extract_strided_slice %170 {offsets = [0, 32], sizes = [8, 32], strides = [1, 1]} : vector<8x128xf32> to vector<8x32xf32>
    %173 = vector.extract_strided_slice %170 {offsets = [0, 64], sizes = [8, 32], strides = [1, 1]} : vector<8x128xf32> to vector<8x32xf32>
    %174 = vector.extract_strided_slice %170 {offsets = [0, 96], sizes = [8, 32], strides = [1, 1]} : vector<8x128xf32> to vector<8x32xf32>
    %175 = arith.mulf %172, %154 : vector<8x32xf32>
    %176 = arith.mulf %171, %173 : vector<8x32xf32>
    %177 = arith.addf %175, %176 : vector<8x32xf32>
    %178 = math.tanh %177 : vector<8x32xf32>
    %179 = arith.mulf %174, %178 : vector<8x32xf32>
    %c6 = arith.constant 6 : index
    %c0_46 = arith.constant 0 : index
    %c0_47 = arith.constant 0 : index
    %180 = vector.load %arg7[%c6, %c0_46, %c0_47] : memref<8x32x1xf32, #tpu.memory_space<vmem>>, vector<1x32x1xf32>
    %181 = vector.shape_cast %180 : vector<1x32x1xf32> to vector<32x1xf32>
    %cst_48 = arith.constant dense<0.000000e+00> : vector<8x1xf32>
    %182 = tpu.matmul %179, %181, %cst_48 {dimension_numbers = #tpu.dot_dimension_numbers<[1], [0], [0], [1], [0, 0, 1, 1], [], []>} : vector<8x32xf32>, vector<32x1xf32>, vector<8x1xf32> -> vector<8x1xf32>
    %183 = arith.addf %160, %182 : vector<8x1xf32>
    %184 = vector.extract_strided_slice %7 {offsets = [56, 0], sizes = [8, 128], strides = [1, 1]} : vector<64x128xf32> to vector<8x128xf32>
    %cst_49 = arith.constant dense<0.000000e+00> : vector<8x128xf32>
    %185 = tpu.matmul %179, %8, %cst_49 {dimension_numbers = #tpu.dot_dimension_numbers<[1], [0], [0], [1], [0, 0, 1, 1], [], []>} : vector<8x32xf32>, vector<32x128xf32>, vector<8x128xf32> -> vector<8x128xf32>
    %186 = arith.addf %184, %185 : vector<8x128xf32>
    %187 = arith.negf %186 : vector<8x128xf32>
    %188 = math.exp %187 : vector<8x128xf32>
    %cst_50 = arith.constant 1.000000e+00 : f32
    %189 = vector.broadcast %cst_50 : f32 to vector<8x128xf32>
    %190 = arith.addf %189, %188 : vector<8x128xf32>
    %191 = arith.divf %189, %190 : vector<8x128xf32>
    %192 = math.tanh %186 : vector<8x128xf32>
    %193 = arith.select %15, %192, %191 : vector<8x128xi1>, vector<8x128xf32>
    %194 = vector.extract_strided_slice %193 {offsets = [0, 0], sizes = [8, 32], strides = [1, 1]} : vector<8x128xf32> to vector<8x32xf32>
    %195 = vector.extract_strided_slice %193 {offsets = [0, 32], sizes = [8, 32], strides = [1, 1]} : vector<8x128xf32> to vector<8x32xf32>
    %196 = vector.extract_strided_slice %193 {offsets = [0, 64], sizes = [8, 32], strides = [1, 1]} : vector<8x128xf32> to vector<8x32xf32>
    %197 = vector.extract_strided_slice %193 {offsets = [0, 96], sizes = [8, 32], strides = [1, 1]} : vector<8x128xf32> to vector<8x32xf32>
    %198 = arith.mulf %195, %177 : vector<8x32xf32>
    %199 = arith.mulf %194, %196 : vector<8x32xf32>
    %200 = arith.addf %198, %199 : vector<8x32xf32>
    %201 = math.tanh %200 : vector<8x32xf32>
    %202 = arith.mulf %197, %201 : vector<8x32xf32>
    %c7 = arith.constant 7 : index
    %c0_51 = arith.constant 0 : index
    %c0_52 = arith.constant 0 : index
    %203 = vector.load %arg7[%c7, %c0_51, %c0_52] : memref<8x32x1xf32, #tpu.memory_space<vmem>>, vector<1x32x1xf32>
    %204 = vector.shape_cast %203 : vector<1x32x1xf32> to vector<32x1xf32>
    %cst_53 = arith.constant dense<0.000000e+00> : vector<8x1xf32>
    %205 = tpu.matmul %202, %204, %cst_53 {dimension_numbers = #tpu.dot_dimension_numbers<[1], [0], [0], [1], [0, 0, 1, 1], [], []>} : vector<8x32xf32>, vector<32x1xf32>, vector<8x1xf32> -> vector<8x1xf32>
    %206 = arith.addf %183, %205 : vector<8x1xf32>
    %c0_54 = arith.constant 0 : index
    %c0_55 = arith.constant 0 : index
    %207 = vector.load %arg6[%c0_54, %c0_55] : memref<8x1xf32, #tpu.memory_space<vmem>>, vector<8x1xf32>
    tpu.vector_store %arg6[%c0_54, %c0_55], %206 {strides = array<i32>} : memref<8x1xf32, #tpu.memory_space<vmem>>, vector<8x1xf32>,
    return
  }
}

</mosaic_0001>

<llo_original>
// kernel: tpu_custom_call.1
$region0: #{tpu_custom_call.1}
  #allocation0 [shape = 'u32[]', space=smem, size = 0x4, offset = 0x4, fixed_abs, tag = 'smem constant byte address 0x4 - core index']
  #allocation1 [shape = 'u32[144,128]{1,0:T(1,128)}', space=vmem, size = 0x12000, scoped, tag = 'internal scratch']
  #allocation2 [shape = 'f32[8,32,1]{2,1,0:T(8,128)}', space=vmem, size = 0x20000, scoped, tag = 'scratch operand']
  #allocation3 [shape = 's32[1]{0}', space=sflag, size = 0x4, scoped, tag = 'scratch operand']
  #allocation4 [shape = 'f32[1,1]{1,0:T(1,128)S(1)}', space=vmem, size = 0x200, scoped, tag = 'scoped memory for tpu_custom_call.1']
  #allocation5 [shape = 's32[]', space=sflag, size = 0x4, offset = 0, fixed_abs, tag = 'sflag constant byte address 0x0 - dummy sync flag']
  %s0 = inlined_call_operand.vmem [shape: f32[64,4], index: 0, kind: input, shape index: {}]
  %s1 = inlined_call_operand.vmem [shape: f32[4,128], index: 1, kind: input, shape index: {}]
  %s2 = inlined_call_operand.vmem [shape: f32[32,128], index: 2, kind: input, shape index: {}]
  %s3 = inlined_call_operand.vmem [shape: f32[1,128], index: 3, kind: input, shape index: {}]
  %s4 = inlined_call_operand.vmem [shape: f32[8,32,1], index: 4, kind: input, shape index: {}]
  %s5 = inlined_call_operand.<no memory space> [shape: f32[1,1], index: 5, kind: input, shape index: {}]
  %s6 = inlined_call_operand.vmem [shape: f32[8,1], index: 6, kind: output, shape index: {}]
  %s7 = sld [smem:[#allocation0]]
  $region64: #{tpu_custom_call.1} parent=0
    _
  %s9 = ssub.s32 1, %s7
  %s10 = scalar_select 0, %s9, %s7
  %v11 = vstv %s5
  %12 = vst [vmem:[#allocation4] sm:$0x1] %v11
  // Predicated region
  $region2: #{tpu_custom_call.1} parent=0 // pred_check
    _
  $region3: #{tpu_custom_call.1} parent=0 // pred_check_branch
    %14 = sbr.rel (0) target = $region5
  $region4: #{tpu_custom_call.1} parent=0 // pred_region
    _
  $region5: #{tpu_custom_call.1} parent=0 // pred_fallthru
    _
  // Predicated region
  $region6: #{tpu_custom_call.1} parent=0 // pred_check
    _
  $region7: #{tpu_custom_call.1} parent=0 // pred_check_branch
    %16 = sbr.rel (0) target = $region9
  $region8: #{tpu_custom_call.1} parent=0 // pred_region
    _
  $region9: #{tpu_custom_call.1} parent=0 // pred_fallthru
    _
  // Predicated region
  $region10: #{tpu_custom_call.1} parent=0 // pred_check
    _
  $region11: #{tpu_custom_call.1} parent=0 // pred_check_branch
    %18 = sbr.rel (0) target = $region13
  $region12: #{tpu_custom_call.1} parent=0 // pred_region
    _
  $region13: #{tpu_custom_call.1} parent=0 // pred_fallthru
    _
  // Predicated region
  $region14: #{tpu_custom_call.1} parent=0 // pred_check
    _
  $region15: #{tpu_custom_call.1} parent=0 // pred_check_branch
    %20 = sbr.rel (0) target = $region17
  $region16: #{tpu_custom_call.1} parent=0 // pred_region
    _
  $region17: #{tpu_custom_call.1} parent=0 // pred_fallthru
    _
  // Predicated region
  $region18: #{tpu_custom_call.1} parent=0 // pred_check
    _
  $region19: #{tpu_custom_call.1} parent=0 // pred_check_branch
    %22 = sbr.rel (0) target = $region21
  $region20: #{tpu_custom_call.1} parent=0 // pred_region
    _
  $region21: #{tpu_custom_call.1} parent=0 // pred_fallthru
    _
  %p24 = scmp.lt.u32.totalorder 256, 8
  %p25 = pneg %p24
  // Predicated region
  $region22: #{tpu_custom_call.1} parent=0 // pred_check
    _
  $region23: #{tpu_custom_call.1} parent=0 // pred_check_branch
    %27 = sbr.rel (%p24) target = $region25
  $region24: #{tpu_custom_call.1} parent=0 // pred_region
    %s42 = sand.u32 256, 7
    %p43 = scmp.eq.s32.totalorder %s42, 0
    // Predicated region
    $region37: #{tpu_custom_call.1} parent=24 // pred_check
      %p44 = pneg %p43
    $region38: #{tpu_custom_call.1} parent=24 // pred_check_branch
      %46 = sbr.rel (%p44) target = $region40
    $region39: #{tpu_custom_call.1} parent=24 // pred_region
      loop: start=0, step=1, limit=1
      $region41: #{tpu_custom_call.1} parent=39 // loop_pre_header
        _
      $region42: #{tpu_custom_call.1} parent=39 // loop_header
        %s48 = sphi 0, %s52
        %p49 = scmp.ge.s32.totalorder %s48, 1
        %s53 = sphi %s4, %s4
        %s54 = sphi [#allocation2], [#allocation2]
      $region43: #{tpu_custom_call.1} parent=39 // loop_header_branch
        %51 = sbr.rel (%p49) target = $region47
      $region44: #{tpu_custom_call.1} parent=39 // loop_body
        %v55 = vld [vmem:[%s53] sm:$0xff]
        %56 = vst [vmem:[%s54] sm:$0xff] %v55
        %v57 = vld [vmem:[%s53 + $0x8] sm:$0xff]
        %58 = vst [vmem:[%s54 + $0x8] sm:$0xff] %v57
        %v59 = vld [vmem:[%s53 + $0x10] sm:$0xff]
        %60 = vst [vmem:[%s54 + $0x10] sm:$0xff] %v59
        %v61 = vld [vmem:[%s53 + $0x18] sm:$0xff]
        %62 = vst [vmem:[%s54 + $0x18] sm:$0xff] %v61
        %v63 = vld [vmem:[%s53 + $0x20] sm:$0xff]
        %64 = vst [vmem:[%s54 + $0x20] sm:$0xff] %v63
        %v65 = vld [vmem:[%s53 + $0x28] sm:$0xff]
        %66 = vst [vmem:[%s54 + $0x28] sm:$0xff] %v65
        %v67 = vld [vmem:[%s53 + $0x30] sm:$0xff]
        %68 = vst [vmem:[%s54 + $0x30] sm:$0xff] %v67
        %v69 = vld [vmem:[%s53 + $0x38] sm:$0xff]
        %70 = vst [vmem:[%s54 + $0x38] sm:$0xff] %v69
        %v71 = vld [vmem:[%s53 + $0x40] sm:$0xff]
        %72 = vst [vmem:[%s54 + $0x40] sm:$0xff] %v71
        %v73 = vld [vmem:[%s53 + $0x48] sm:$0xff]
        %74 = vst [vmem:[%s54 + $0x48] sm:$0xff] %v73
        %v75 = vld [vmem:[%s53 + $0x50] sm:$0xff]
        %76 = vst [vmem:[%s54 + $0x50] sm:$0xff] %v75
        %v77 = vld [vmem:[%s53 + $0x58] sm:$0xff]
        %78 = vst [vmem:[%s54 + $0x58] sm:$0xff] %v77
        %v79 = vld [vmem:[%s53 + $0x60] sm:$0xff]
        %80 = vst [vmem:[%s54 + $0x60] sm:$0xff] %v79
        %v81 = vld [vmem:[%s53 + $0x68] sm:$0xff]
        %82 = vst [vmem:[%s54 + $0x68] sm:$0xff] %v81
        %v83 = vld [vmem:[%s53 + $0x70] sm:$0xff]
        %84 = vst [vmem:[%s54 + $0x70] sm:$0xff] %v83
        %v85 = vld [vmem:[%s53 + $0x78] sm:$0xff]
        %86 = vst [vmem:[%s54 + $0x78] sm:$0xff] %v85
        %v87 = vld [vmem:[%s53 + $0x80] sm:$0xff]
        %88 = vst [vmem:[%s54 + $0x80] sm:$0xff] %v87
        %v89 = vld [vmem:[%s53 + $0x88] sm:$0xff]
        %90 = vst [vmem:[%s54 + $0x88] sm:$0xff] %v89
        %v91 = vld [vmem:[%s53 + $0x90] sm:$0xff]
        %92 = vst [vmem:[%s54 + $0x90] sm:$0xff] %v91
        %v93 = vld [vmem:[%s53 + $0x98] sm:$0xff]
        %94 = vst [vmem:[%s54 + $0x98] sm:$0xff] %v93
        %v95 = vld [vmem:[%s53 + $0xa0] sm:$0xff]
        %96 = vst [vmem:[%s54 + $0xa0] sm:$0xff] %v95
        %v97 = vld [vmem:[%s53 + $0xa8] sm:$0xff]
        %98 = vst [vmem:[%s54 + $0xa8] sm:$0xff] %v97
        %v99 = vld [vmem:[%s53 + $0xb0] sm:$0xff]
        %100 = vst [vmem:[%s54 + $0xb0] sm:$0xff] %v99
        %v101 = vld [vmem:[%s53 + $0xb8] sm:$0xff]
        %102 = vst [vmem:[%s54 + $0xb8] sm:$0xff] %v101
        %v103 = vld [vmem:[%s53 + $0xc0] sm:$0xff]
        %104 = vst [vmem:[%s54 + $0xc0] sm:$0xff] %v103
        %v105 = vld [vmem:[%s53 + $0xc8] sm:$0xff]
        %106 = vst [vmem:[%s54 + $0xc8] sm:$0xff] %v105
        %v107 = vld [vmem:[%s53 + $0xd0] sm:$0xff]
        %108 = vst [vmem:[%s54 + $0xd0] sm:$0xff] %v107
        %v109 = vld [vmem:[%s53 + $0xd8] sm:$0xff]
        %110 = vst [vmem:[%s54 + $0xd8] sm:$0xff] %v109
        %v111 = vld [vmem:[%s53 + $0xe0] sm:$0xff]
        %112 = vst [vmem:[%s54 + $0xe0] sm:$0xff] %v111
        %v113 = vld [vmem:[%s53 + $0xe8] sm:$0xff]
        %114 = vst [vmem:[%s54 + $0xe8] sm:$0xff] %v113
        %v115 = vld [vmem:[%s53 + $0xf0] sm:$0xff]
        %116 = vst [vmem:[%s54 + $0xf0] sm:$0xff] %v115
        %v117 = vld [vmem:[%s53 + $0xf8] sm:$0xff]
        %118 = vst [vmem:[%s54 + $0xf8] sm:$0xff] %v117
      $region45: #{tpu_custom_call.1} parent=39 // loop_footer
        %s52 = sadd.s32 1, %s48
      $region46: #{tpu_custom_call.1} parent=39 // loop_footer_branch
        %47 = sbr.rel target = $region42
      $region47: #{tpu_custom_call.1} parent=39 // loop_exit
        _
    $region40: #{tpu_custom_call.1} parent=24 // pred_fallthru
      _
    %p119 = pneg %p43
    // Predicated region
    $region48: #{tpu_custom_call.1} parent=24 // pred_check
      _
    $region49: #{tpu_custom_call.1} parent=24 // pred_check_branch
      %121 = sbr.rel (%p43) target = $region51
    $region50: #{tpu_custom_call.1} parent=24 // pred_region
      %s122 = sand.u32 256, 7
    $region51: #{tpu_custom_call.1} parent=24 // pred_fallthru
      _
  $region25: #{tpu_custom_call.1} parent=0 // pred_fallthru
    _
  // Predicated region
  $region26: #{tpu_custom_call.1} parent=0 // pred_check
    %p28 = pneg %p24
  $region27: #{tpu_custom_call.1} parent=0 // pred_check_branch
    %30 = sbr.rel (%p28) target = $region29
  $region28: #{tpu_custom_call.1} parent=0 // pred_region
    %s31 = sshllo.u32 0, 256
    loop: start=0, step=1, limit=1
    $region30: #{tpu_custom_call.1} parent=28 // loop_pre_header
      _
    $region31: #{tpu_custom_call.1} parent=28 // loop_header
      %s33 = sphi 0, %s37
      %p34 = scmp.ge.s32.totalorder %s33, 1
      %s38 = sphi %s4, %s4
      %s39 = sphi [#allocation2], [#allocation2]
    $region32: #{tpu_custom_call.1} parent=28 // loop_header_branch
      %36 = sbr.rel (%p34) target = $region36
    $region33: #{tpu_custom_call.1} parent=28 // loop_body
      %v40 = vld [vmem:[%s38] sm:%s31]
      %41 = vst [vmem:[%s39] sm:%s31] %v40
    $region34: #{tpu_custom_call.1} parent=28 // loop_footer
      %s37 = sadd.s32 1, %s33
    $region35: #{tpu_custom_call.1} parent=28 // loop_footer_branch
      %32 = sbr.rel target = $region31
    $region36: #{tpu_custom_call.1} parent=28 // loop_exit
      _
  $region29: #{tpu_custom_call.1} parent=0 // pred_fallthru
    _
  // Predicated region
  $region52: #{tpu_custom_call.1} parent=0 // pred_check
    _
  $region53: #{tpu_custom_call.1} parent=0 // pred_check_branch
    %125 = sbr.rel (0) target = $region55
  $region54: #{tpu_custom_call.1} parent=0 // pred_region
    %126 = vsyncadd [#allocation3], 4096
  $region55: #{tpu_custom_call.1} parent=0 // pred_fallthru
    _
  %v127 = vld [vmem:[%s0] sm:$0xff]
  %v128 = vld [vmem:[%s0 + $0x8] sm:$0xff]
  %v129 = vld [vmem:[%s0 + $0x10] sm:$0xff]
  %v130 = vld [vmem:[%s0 + $0x18] sm:$0xff]
  %v131 = vld [vmem:[%s0 + $0x20] sm:$0xff]
  %v132 = vld [vmem:[%s0 + $0x28] sm:$0xff]
  %v133 = vld [vmem:[%s0 + $0x30] sm:$0xff]
  %v134 = vld [vmem:[%s0 + $0x38] sm:$0xff]
  %v135 = vld [vmem:[%s1] sm:$0xf]
  %v136 = vld [vmem:[%s3] sm:$0x1]
  %v138 = vlaneseq
  %v139 = vshrl.u32 %v138, 7
  %v140 = vsub.s32 0, %v139
  %v141 = vrot.slane %v136, %v140
  %vm143 = vcmask 31744
  %v145 = vsel %vm143, %v127, 0
  %v148 = vsel %vm143, %v128, 0
  %v151 = vsel %vm143, %v129, 0
  %v154 = vsel %vm143, %v130, 0
  %v157 = vsel %vm143, %v131, 0
  %v160 = vsel %vm143, %v132, 0
  %v163 = vsel %vm143, %v133, 0
  %v166 = vsel %vm143, %v134, 0
  %vm168 = vcmask 1043456
  %v170 = vsel %vm168, %v135, 0
  %172 = vmatprep.subr.mxu0 0.0
  %173 = vmatpush1.msra.mxu0 %v170
  %174 = vmatprep.subr.mxu0 0.0
  %175 = vmatpush1.msra.mxu0 0.0
  %176 = vmatprep.subr.mxu0 0.0
  %177 = vmatpush1.msra.mxu0 0.0
  %178 = vmatprep.subr.mxu0 0.0
  %179 = vmatpush1.msra.mxu0 0.0
  %180 = vmatprep.subr.mxu0 0.0
  %181 = vmatpush1.msra.mxu0 0.0
  %182 = vmatprep.subr.mxu0 0.0
  %183 = vmatpush1.msra.mxu0 0.0
  %184 = vmatprep.subr.mxu0 0.0
  %185 = vmatpush1.msra.mxu0 0.0
  %186 = vmatprep.subr.mxu0 0.0
  %187 = vmatpush1.msra.mxu0 0.0
  %188 = vmatprep.subr.mxu0 0.0
  %189 = vmatpush1.msra.mxu0 0.0
  %190 = vmatprep.subr.mxu0 0.0
  %191 = vmatpush1.msra.mxu0 0.0
  %192 = vmatprep.subr.mxu0 0.0
  %193 = vmatpush1.msra.mxu0 0.0
  %194 = vmatprep.subr.mxu0 0.0
  %195 = vmatpush1.msra.mxu0 0.0
  %196 = vmatprep.subr.mxu0 0.0
  %197 = vmatpush1.msra.mxu0 0.0
  %198 = vmatprep.subr.mxu0 0.0
  %199 = vmatpush1.msra.mxu0 0.0
  %200 = vmatprep.subr.mxu0 0.0
  %201 = vmatpush1.msra.mxu0 0.0
  %202 = vmatprep.subr.mxu0 0.0
  %203 = vmatpush1.msra.mxu0 0.0
  %204 = vmatprep.subr.mxu0 0.0
  %205 = vmatpush1.msra.mxu0 0.0
  %206 = vmatprep.subr.mxu0 0.0
  %207 = vmatpush1.msra.mxu0 0.0
  %208 = vmatprep.subr.mxu0 0.0
  %209 = vmatpush1.msra.mxu0 0.0
  %210 = vmatprep.subr.mxu0 0.0
  %211 = vmatpush1.msra.mxu0 0.0
  %212 = vmatprep.subr.mxu0 0.0
  %213 = vmatpush1.msra.mxu0 0.0
  %214 = vmatprep.subr.mxu0 0.0
  %215 = vmatpush1.msra.mxu0 0.0
  %216 = vmatprep.subr.mxu0 0.0
  %217 = vmatpush1.msra.mxu0 0.0
  %218 = vmatprep.subr.mxu0 0.0
  %219 = vmatpush1.msra.mxu0 0.0
  %220 = vmatprep.subr.mxu0 0.0
  %221 = vmatpush1.msra.mxu0 0.0
  %222 = vmatprep.subr.mxu0 0.0
  %223 = vmatpush1.msra.mxu0 0.0
  %224 = vmatprep.subr.mxu0 0.0
  %225 = vmatpush1.msra.mxu0 0.0
  %226 = vmatprep.subr.mxu0 0.0
  %227 = vmatpush1.msra.mxu0 0.0
  %228 = vmatprep.subr.mxu0 0.0
  %229 = vmatpush1.msra.mxu0 0.0
  %230 = vmatprep.subr.mxu0 0.0
  %231 = vmatpush1.msra.mxu0 0.0
  %232 = vmatprep.subr.mxu0 0.0
  %233 = vmatpush1.msra.mxu0 0.0
  %234 = vmatprep.subr.mxu0 0.0
  %235 = vmatpush1.msra.mxu0 0.0
  %236 = vmatprep.mubr.f32.mxu0 0.0
  %237 = vmatmul.mubr.f32.gmra.mrb[0].mxu0 %v145
  %v238 = vpop.f32.mrb[0].mxu0
  %v239 = vadd.f32 %v141, %v238
  %v240 = vpop.f32.mrb[0].mxu0
  %241 = vmatprep.mubr.f32.mxu0 0.0
  %242 = vmatmul.mubr.f32.gmra.mrb[0].mxu0 %v148
  %v243 = vpop.f32.mrb[0].mxu0
  %v244 = vadd.f32 %v141, %v243
  %v245 = vpop.f32.mrb[0].mxu0
  %246 = vmatprep.mubr.f32.mxu0 0.0
  %247 = vmatmul.mubr.f32.gmra.mrb[0].mxu0 %v151
  %v248 = vpop.f32.mrb[0].mxu0
  %v249 = vadd.f32 %v141, %v248
  %v250 = vpop.f32.mrb[0].mxu0
  %251 = vmatprep.mubr.f32.mxu0 0.0
  %252 = vmatmul.mubr.f32.gmra.mrb[0].mxu0 %v154
  %v253 = vpop.f32.mrb[0].mxu0
  %v254 = vadd.f32 %v141, %v253
  %v255 = vpop.f32.mrb[0].mxu0
  %256 = vmatprep.mubr.f32.mxu0 0.0
  %257 = vmatmul.mubr.f32.gmra.mrb[0].mxu0 %v157
  %v258 = vpop.f32.mrb[0].mxu0
  %v259 = vadd.f32 %v141, %v258
  %v260 = vpop.f32.mrb[0].mxu0
  %261 = vmatprep.mubr.f32.mxu0 0.0
  %262 = vmatmul.mubr.f32.gmra.mrb[0].mxu0 %v160
  %v263 = vpop.f32.mrb[0].mxu0
  %v264 = vadd.f32 %v141, %v263
  %v265 = vpop.f32.mrb[0].mxu0
  %266 = vmatprep.mubr.f32.mxu0 0.0
  %267 = vmatmul.mubr.f32.gmra.mrb[0].mxu0 %v163
  %v268 = vpop.f32.mrb[0].mxu0
  %v269 = vadd.f32 %v141, %v268
  %v270 = vpop.f32.mrb[0].mxu0
  %271 = vmatprep.mubr.f32.mxu0 0.0
  %272 = vmatmul.mubr.f32.gmra.mrb[0].mxu0 %v166
  %v273 = vpop.f32.mrb[0].mxu0
  %v274 = vadd.f32 %v141, %v273
  %v275 = vpop.f32.mrb[0].mxu0
  %276 = vdwg.mxu0
  %v277 = vld [vmem:[%s2] sm:$0xff]
  %v278 = vld [vmem:[%s2 + $0x8] sm:$0xff]
  %v279 = vld [vmem:[%s2 + $0x10] sm:$0xff]
  %v280 = vld [vmem:[%s2 + $0x18] sm:$0xff]
  %v281 = vld [vmem:[#allocation4] sm:$0x1]
  %v282 = vlaneseq
  %v283 = vand.u32 %v282, 127
  %vm284 = vcmp.ge.s32.totalorder %v283, 64
  %vm285 = vcmp.lt.s32.totalorder %v283, 96
  %vm286 = vmand %vm284, %vm285
  %v288 = vlaneseq
  %v289 = vshrl.u32 %v288, 7
  %v290 = vsub.s32 0, %v289
  %v291 = vrot.slane %v281, %v290
  %v293 = vadd.f32 %v291, 0.0
  %vm294 = vcmask 261120
  %v296 = vsel %vm294, 0.0, 0
  %298 = vmatprep.subr.mxu0 0.0
  %299 = vmatpush1.msra.mxu0 %v277
  %300 = vmatprep.subr.mxu0 0.0
  %301 = vmatpush1.msra.mxu0 %v278
  %302 = vmatprep.subr.mxu0 0.0
  %303 = vmatpush1.msra.mxu0 %v279
  %304 = vmatprep.subr.mxu0 0.0
  %305 = vmatpush1.msra.mxu0 %v280
  %306 = vmatprep.subr.mxu0 0.0
  %307 = vmatpush1.msra.mxu0 0.0
  %308 = vmatprep.subr.mxu0 0.0
  %309 = vmatpush1.msra.mxu0 0.0
  %310 = vmatprep.subr.mxu0 0.0
  %311 = vmatpush1.msra.mxu0 0.0
  %312 = vmatprep.subr.mxu0 0.0
  %313 = vmatpush1.msra.mxu0 0.0
  %314 = vmatprep.subr.mxu0 0.0
  %315 = vmatpush1.msra.mxu0 0.0
  %316 = vmatprep.subr.mxu0 0.0
  %317 = vmatpush1.msra.mxu0 0.0
  %318 = vmatprep.subr.mxu0 0.0
  %319 = vmatpush1.msra.mxu0 0.0
  %320 = vmatprep.subr.mxu0 0.0
  %321 = vmatpush1.msra.mxu0 0.0
  %322 = vmatprep.subr.mxu0 0.0
  %323 = vmatpush1.msra.mxu0 0.0
  %324 = vmatprep.subr.mxu0 0.0
  %325 = vmatpush1.msra.mxu0 0.0
  %326 = vmatprep.subr.mxu0 0.0
  %327 = vmatpush1.msra.mxu0 0.0
  %328 = vmatprep.subr.mxu0 0.0
  %329 = vmatpush1.msra.mxu0 0.0
  %330 = vmatprep.subr.mxu0 0.0
  %331 = vmatpush1.msra.mxu0 0.0
  %332 = vmatprep.subr.mxu0 0.0
  %333 = vmatpush1.msra.mxu0 0.0
  %334 = vmatprep.subr.mxu0 0.0
  %335 = vmatpush1.msra.mxu0 0.0
  %336 = vmatprep.subr.mxu0 0.0
  %337 = vmatpush1.msra.mxu0 0.0
  %338 = vmatprep.subr.mxu0 0.0
  %339 = vmatpush1.msra.mxu0 0.0
  %340 = vmatprep.subr.mxu0 0.0
  %341 = vmatpush1.msra.mxu0 0.0
  %342 = vmatprep.subr.mxu0 0.0
  %343 = vmatpush1.msra.mxu0 0.0
  %344 = vmatprep.subr.mxu0 0.0
  %345 = vmatpush1.msra.mxu0 0.0
  %346 = vmatprep.subr.mxu0 0.0
  %347 = vmatpush1.msra.mxu0 0.0
  %348 = vmatprep.subr.mxu0 0.0
  %349 = vmatpush1.msra.mxu0 0.0
  %350 = vmatprep.subr.mxu0 0.0
  %351 = vmatpush1.msra.mxu0 0.0
  %352 = vmatprep.subr.mxu0 0.0
  %353 = vmatpush1.msra.mxu0 0.0
  %354 = vmatprep.subr.mxu0 0.0
  %355 = vmatpush1.msra.mxu0 0.0
  %356 = vmatprep.subr.mxu0 0.0
  %357 = vmatpush1.msra.mxu0 0.0
  %358 = vmatprep.subr.mxu0 0.0
  %359 = vmatpush1.msra.mxu0 0.0
  %360 = vmatprep.subr.mxu0 0.0
  %361 = vmatpush1.msra.mxu0 0.0
  %362 = vmatprep.mubr.f32.mxu0 0.0
  %363 = vmatmul.mubr.f32.gmra.mrb[0].mxu0 %v296
  %v364 = vpop.f32.mrb[0].mxu0
  %v365 = vadd.f32 0.0, %v364
  %v366 = vpop.f32.mrb[0].mxu0
  %367 = vdwg.mxu0
  %v368 = vadd.f32 %v239, %v365
  %v369 = vxor.u32 %v368, 2147483648
  %v370 = vmul.f32 %v369, 1.442695
  %v371 = vpow.pop %v370
  %v372 = vadd.f32 %v371, 1.0
  %v373 = vrcp.pop %v372
  %v374 = vmul.f32 1.0, %v373
  %v375 = vtanh.pop %v368
  %v376 = vsel %vm286, %v375, %v374
  %v377 = vmul.f32 %v376, 0.0
  %379 = vrot.lane.b32.xlu0 %v376, 64
  %v380 = vpop.permute.xlu0 %379
  %v382 = vmul.f32 %v376, %v380
  %384 = vrot.lane.b32.xlu0 %v382, 32
  %v385 = vpop.permute.xlu0 %384
  %v387 = vadd.f32 %v377, %v385
  %v388 = vtanh.pop %v387
  %390 = vrot.lane.b32.xlu0 %v388, 64
  %v391 = vpop.permute.xlu0 %390
  %v393 = vmul.f32 %v376, %v391
  %s394 = smul.u32 8, 32
  %s395 = smul.u32 %s394, 1
  %s396 = sshll.u32 %s395, 4
  %397 = dma.done [#allocation3], %s396
  %v398 = vld [vmem:[#allocation2] sm:$0xff]
  %v399 = vld [vmem:[#allocation2 + $0x8] sm:$0xff]
  %v400 = vld [vmem:[#allocation2 + $0x10] sm:$0xff]
  %v401 = vld [vmem:[#allocation2 + $0x18] sm:$0xff]
  %403 = vrot.lane.b32.xlu0 %v393, 32
  %v404 = vpop.permute.xlu0 %403
  %v405 = vsel %vm294, %v404, 0
  %407 = vmatprep.subr.mxu0 0.0
  %408 = vmatpush1.msra.mxu0 %v398
  %409 = vmatprep.subr.mxu0 0.0
  %410 = vmatpush1.msra.mxu0 %v399
  %411 = vmatprep.subr.mxu0 0.0
  %412 = vmatpush1.msra.mxu0 %v400
  %413 = vmatprep.subr.mxu0 0.0
  %414 = vmatpush1.msra.mxu0 %v401
  %415 = vmatprep.subr.mxu0 0.0
  %416 = vmatpush1.msra.mxu0 0.0
  %417 = vmatprep.subr.mxu0 0.0
  %418 = vmatpush1.msra.mxu0 0.0
  %419 = vmatprep.subr.mxu0 0.0
  %420 = vmatpush1.msra.mxu0 0.0
  %421 = vmatprep.subr.mxu0 0.0
  %422 = vmatpush1.msra.mxu0 0.0
  %423 = vmatprep.subr.mxu0 0.0
  %424 = vmatpush1.msra.mxu0 0.0
  %425 = vmatprep.subr.mxu0 0.0
  %426 = vmatpush1.msra.mxu0 0.0
  %427 = vmatprep.subr.mxu0 0.0
  %428 = vmatpush1.msra.mxu0 0.0
  %429 = vmatprep.subr.mxu0 0.0
  %430 = vmatpush1.msra.mxu0 0.0
  %431 = vmatprep.subr.mxu0 0.0
  %432 = vmatpush1.msra.mxu0 0.0
  %433 = vmatprep.subr.mxu0 0.0
  %434 = vmatpush1.msra.mxu0 0.0
  %435 = vmatprep.subr.mxu0 0.0
  %436 = vmatpush1.msra.mxu0 0.0
  %437 = vmatprep.subr.mxu0 0.0
  %438 = vmatpush1.msra.mxu0 0.0
  %439 = vmatprep.subr.mxu0 0.0
  %440 = vmatpush1.msra.mxu0 0.0
  %441 = vmatprep.subr.mxu0 0.0
  %442 = vmatpush1.msra.mxu0 0.0
  %443 = vmatprep.subr.mxu0 0.0
  %444 = vmatpush1.msra.mxu0 0.0
  %445 = vmatprep.subr.mxu0 0.0
  %446 = vmatpush1.msra.mxu0 0.0
  %447 = vmatprep.subr.mxu0 0.0
  %448 = vmatpush1.msra.mxu0 0.0
  %449 = vmatprep.subr.mxu0 0.0
  %450 = vmatpush1.msra.mxu0 0.0
  %451 = vmatprep.subr.mxu0 0.0
  %452 = vmatpush1.msra.mxu0 0.0
  %453 = vmatprep.subr.mxu0 0.0
  %454 = vmatpush1.msra.mxu0 0.0
  %455 = vmatprep.subr.mxu0 0.0
  %456 = vmatpush1.msra.mxu0 0.0
  %457 = vmatprep.subr.mxu0 0.0
  %458 = vmatpush1.msra.mxu0 0.0
  %459 = vmatprep.subr.mxu0 0.0
  %460 = vmatpush1.msra.mxu0 0.0
  %461 = vmatprep.subr.mxu0 0.0
  %462 = vmatpush1.msra.mxu0 0.0
  %463 = vmatprep.subr.mxu0 0.0
  %464 = vmatpush1.msra.mxu0 0.0
  %465 = vmatprep.subr.mxu0 0.0
  %466 = vmatpush1.msra.mxu0 0.0
  %467 = vmatprep.subr.mxu0 0.0
  %468 = vmatpush1.msra.mxu0 0.0
  %469 = vmatprep.subr.mxu0 0.0
  %470 = vmatpush1.msra.mxu0 0.0
  %471 = vmatprep.mubr.f32.mxu0 0.0
  %472 = vmatmul.mubr.f32.gmra.mrb[0].mxu0 %v405
  %v473 = vpop.f32.mrb[0].mxu0
  %v474 = vadd.f32 0.0, %v473
  %v475 = vpop.f32.mrb[0].mxu0
  %476 = vdwg.mxu0
  %v477 = vadd.f32 %v293, %v474
  %478 = vmatprep.subr.mxu0 0.0
  %479 = vmatpush1.msra.mxu0 %v277
  %480 = vmatprep.subr.mxu0 0.0
  %481 = vmatpush1.msra.mxu0 %v278
  %482 = vmatprep.subr.mxu0 0.0
  %483 = vmatpush1.msra.mxu0 %v279
  %484 = vmatprep.subr.mxu0 0.0
  %485 = vmatpush1.msra.mxu0 %v280
  %486 = vmatprep.subr.mxu0 0.0
  %487 = vmatpush1.msra.mxu0 0.0
  %488 = vmatprep.subr.mxu0 0.0
  %489 = vmatpush1.msra.mxu0 0.0
  %490 = vmatprep.subr.mxu0 0.0
  %491 = vmatpush1.msra.mxu0 0.0
  %492 = vmatprep.subr.mxu0 0.0
  %493 = vmatpush1.msra.mxu0 0.0
  %494 = vmatprep.subr.mxu0 0.0
  %495 = vmatpush1.msra.mxu0 0.0
  %496 = vmatprep.subr.mxu0 0.0
  %497 = vmatpush1.msra.mxu0 0.0
  %498 = vmatprep.subr.mxu0 0.0
  %499 = vmatpush1.msra.mxu0 0.0
  %500 = vmatprep.subr.mxu0 0.0
  %501 = vmatpush1.msra.mxu0 0.0
  %502 = vmatprep.subr.mxu0 0.0
  %503 = vmatpush1.msra.mxu0 0.0
  %504 = vmatprep.subr.mxu0 0.0
  %505 = vmatpush1.msra.mxu0 0.0
  %506 = vmatprep.subr.mxu0 0.0
  %507 = vmatpush1.msra.mxu0 0.0
  %508 = vmatprep.subr.mxu0 0.0
  %509 = vmatpush1.msra.mxu0 0.0
  %510 = vmatprep.subr.mxu0 0.0
  %511 = vmatpush1.msra.mxu0 0.0
  %512 = vmatprep.subr.mxu0 0.0
  %513 = vmatpush1.msra.mxu0 0.0
  %514 = vmatprep.subr.mxu0 0.0
  %515 = vmatpush1.msra.mxu0 0.0
  %516 = vmatprep.subr.mxu0 0.0
  %517 = vmatpush1.msra.mxu0 0.0
  %518 = vmatprep.subr.mxu0 0.0
  %519 = vmatpush1.msra.mxu0 0.0
  %520 = vmatprep.subr.mxu0 0.0
  %521 = vmatpush1.msra.mxu0 0.0
  %522 = vmatprep.subr.mxu0 0.0
  %523 = vmatpush1.msra.mxu0 0.0
  %524 = vmatprep.subr.mxu0 0.0
  %525 = vmatpush1.msra.mxu0 0.0
  %526 = vmatprep.subr.mxu0 0.0
  %527 = vmatpush1.msra.mxu0 0.0
  %528 = vmatprep.subr.mxu0 0.0
  %529 = vmatpush1.msra.mxu0 0.0
  %530 = vmatprep.subr.mxu0 0.0
  %531 = vmatpush1.msra.mxu0 0.0
  %532 = vmatprep.subr.mxu0 0.0
  %533 = vmatpush1.msra.mxu0 0.0
  %534 = vmatprep.subr.mxu0 0.0
  %535 = vmatpush1.msra.mxu0 0.0
  %536 = vmatprep.subr.mxu0 0.0
  %537 = vmatpush1.msra.mxu0 0.0
  %538 = vmatprep.subr.mxu0 0.0
  %539 = vmatpush1.msra.mxu0 0.0
  %540 = vmatprep.subr.mxu0 0.0
  %541 = vmatpush1.msra.mxu0 0.0
  %542 = vmatprep.mubr.f32.mxu0 0.0
  %543 = vmatmul.mubr.f32.gmra.mrb[0].mxu0 %v405
  %v544 = vpop.f32.mrb[0].mxu0
  %v545 = vadd.f32 0.0, %v544
  %v546 = vpop.f32.mrb[0].mxu0
  %547 = vdwg.mxu0
  %v548 = vadd.f32 %v244, %v545
  %v549 = vxor.u32 %v548, 2147483648
  %v550 = vmul.f32 %v549, 1.442695
  %v551 = vpow.pop %v550
  %v552 = vadd.f32 %v551, 1.0
  %v553 = vrcp.pop %v552
  %v554 = vmul.f32 1.0, %v553
  %v555 = vtanh.pop %v548
  %v556 = vsel %vm286, %v555, %v554
  %v557 = vmul.f32 %v556, %v387
  %559 = vrot.lane.b32.xlu0 %v556, 64
  %v560 = vpop.permute.xlu0 %559
  %v562 = vmul.f32 %v556, %v560
  %564 = vrot.lane.b32.xlu0 %v562, 32
  %v565 = vpop.permute.xlu0 %564
  %v567 = vadd.f32 %v557, %v565
  %v568 = vtanh.pop %v567
  %570 = vrot.lane.b32.xlu0 %v568, 64
  %v571 = vpop.permute.xlu0 %570
  %v573 = vmul.f32 %v556, %v571
  %s574 = scalar_lea.vmem [#allocation2], 32
  %v575 = vld [vmem:[%s574] sm:$0xff]
  %v576 = vld [vmem:[%s574 + $0x8] sm:$0xff]
  %v577 = vld [vmem:[%s574 + $0x10] sm:$0xff]
  %v578 = vld [vmem:[%s574 + $0x18] sm:$0xff]
  %580 = vrot.lane.b32.xlu0 %v573, 32
  %v581 = vpop.permute.xlu0 %580
  %v582 = vsel %vm294, %v581, 0
  %584 = vmatprep.subr.mxu0 0.0
  %585 = vmatpush1.msra.mxu0 %v575
  %586 = vmatprep.subr.mxu0 0.0
  %587 = vmatpush1.msra.mxu0 %v576
  %588 = vmatprep.subr.mxu0 0.0
  %589 = vmatpush1.msra.mxu0 %v577
  %590 = vmatprep.subr.mxu0 0.0
  %591 = vmatpush1.msra.mxu0 %v578
  %592 = vmatprep.subr.mxu0 0.0
  %593 = vmatpush1.msra.mxu0 0.0
  %594 = vmatprep.subr.mxu0 0.0
  %595 = vmatpush1.msra.mxu0 0.0
  %596 = vmatprep.subr.mxu0 0.0
  %597 = vmatpush1.msra.mxu0 0.0
  %598 = vmatprep.subr.mxu0 0.0
  %599 = vmatpush1.msra.mxu0 0.0
  %600 = vmatprep.subr.mxu0 0.0
  %601 = vmatpush1.msra.mxu0 0.0
  %602 = vmatprep.subr.mxu0 0.0
  %603 = vmatpush1.msra.mxu0 0.0
  %604 = vmatprep.subr.mxu0 0.0
  %605 = vmatpush1.msra.mxu0 0.0
  %606 = vmatprep.subr.mxu0 0.0
  %607 = vmatpush1.msra.mxu0 0.0
  %608 = vmatprep.subr.mxu0 0.0
  %609 = vmatpush1.msra.mxu0 0.0
  %610 = vmatprep.subr.mxu0 0.0
  %611 = vmatpush1.msra.mxu0 0.0
  %612 = vmatprep.subr.mxu0 0.0
  %613 = vmatpush1.msra.mxu0 0.0
  %614 = vmatprep.subr.mxu0 0.0
  %615 = vmatpush1.msra.mxu0 0.0
  %616 = vmatprep.subr.mxu0 0.0
  %617 = vmatpush1.msra.mxu0 0.0
  %618 = vmatprep.subr.mxu0 0.0
  %619 = vmatpush1.msra.mxu0 0.0
  %620 = vmatprep.subr.mxu0 0.0
  %621 = vmatpush1.msra.mxu0 0.0
  %622 = vmatprep.subr.mxu0 0.0
  %623 = vmatpush1.msra.mxu0 0.0
  %624 = vmatprep.subr.mxu0 0.0
  %625 = vmatpush1.msra.mxu0 0.0
  %626 = vmatprep.subr.mxu0 0.0
  %627 = vmatpush1.msra.mxu0 0.0
  %628 = vmatprep.subr.mxu0 0.0
  %629 = vmatpush1.msra.mxu0 0.0
  %630 = vmatprep.subr.mxu0 0.0
  %631 = vmatpush1.msra.mxu0 0.0
  %632 = vmatprep.subr.mxu0 0.0
  %633 = vmatpush1.msra.mxu0 0.0
  %634 = vmatprep.subr.mxu0 0.0
  %635 = vmatpush1.msra.mxu0 0.0
  %636 = vmatprep.subr.mxu0 0.0
  %637 = vmatpush1.msra.mxu0 0.0
  %638 = vmatprep.subr.mxu0 0.0
  %639 = vmatpush1.msra.mxu0 0.0
  %640 = vmatprep.subr.mxu0 0.0
  %641 = vmatpush1.msra.mxu0 0.0
  %642 = vmatprep.subr.mxu0 0.0
  %643 = vmatpush1.msra.mxu0 0.0
  %644 = vmatprep.subr.mxu0 0.0
  %645 = vmatpush1.msra.mxu0 0.0
  %646 = vmatprep.subr.mxu0 0.0
  %647 = vmatpush1.msra.mxu0 0.0
  %648 = vmatprep.mubr.f32.mxu0 0.0
  %649 = vmatmul.mubr.f32.gmra.mrb[0].mxu0 %v582
  %v650 = vpop.f32.mrb[0].mxu0
  %v651 = vadd.f32 0.0, %v650
  %v652 = vpop.f32.mrb[0].mxu0
  %653 = vdwg.mxu0
  %v654 = vadd.f32 %v477, %v651
  %655 = vmatprep.subr.mxu0 0.0
  %656 = vmatpush1.msra.mxu0 %v277
  %657 = vmatprep.subr.mxu0 0.0
  %658 = vmatpush1.msra.mxu0 %v278
  %659 = vmatprep.subr.mxu0 0.0
  %660 = vmatpush1.msra.mxu0 %v279
  %661 = vmatprep.subr.mxu0 0.0
  %662 = vmatpush1.msra.mxu0 %v280
  %663 = vmatprep.subr.mxu0 0.0
  %664 = vmatpush1.msra.mxu0 0.0
  %665 = vmatprep.subr.mxu0 0.0
  %666 = vmatpush1.msra.mxu0 0.0
  %667 = vmatprep.subr.mxu0 0.0
  %668 = vmatpush1.msra.mxu0 0.0
  %669 = vmatprep.subr.mxu0 0.0
  %670 = vmatpush1.msra.mxu0 0.0
  %671 = vmatprep.subr.mxu0 0.0
  %672 = vmatpush1.msra.mxu0 0.0
  %673 = vmatprep.subr.mxu0 0.0
  %674 = vmatpush1.msra.mxu0 0.0
  %675 = vmatprep.subr.mxu0 0.0
  %676 = vmatpush1.msra.mxu0 0.0
  %677 = vmatprep.subr.mxu0 0.0
  %678 = vmatpush1.msra.mxu0 0.0
  %679 = vmatprep.subr.mxu0 0.0
  %680 = vmatpush1.msra.mxu0 0.0
  %681 = vmatprep.subr.mxu0 0.0
  %682 = vmatpush1.msra.mxu0 0.0
  %683 = vmatprep.subr.mxu0 0.0
  %684 = vmatpush1.msra.mxu0 0.0
  %685 = vmatprep.subr.mxu0 0.0
  %686 = vmatpush1.msra.mxu0 0.0
  %687 = vmatprep.subr.mxu0 0.0
  %688 = vmatpush1.msra.mxu0 0.0
  %689 = vmatprep.subr.mxu0 0.0
  %690 = vmatpush1.msra.mxu0 0.0
  %691 = vmatprep.subr.mxu0 0.0
  %692 = vmatpush1.msra.mxu0 0.0
  %693 = vmatprep.subr.mxu0 0.0
  %694 = vmatpush1.msra.mxu0 0.0
  %695 = vmatprep.subr.mxu0 0.0
  %696 = vmatpush1.msra.mxu0 0.0
  %697 = vmatprep.subr.mxu0 0.0
  %698 = vmatpush1.msra.mxu0 0.0
  %699 = vmatprep.subr.mxu0 0.0
  %700 = vmatpush1.msra.mxu0 0.0
  %701 = vmatprep.subr.mxu0 0.0
  %702 = vmatpush1.msra.mxu0 0.0
  %703 = vmatprep.subr.mxu0 0.0
  %704 = vmatpush1.msra.mxu0 0.0
  %705 = vmatprep.subr.mxu0 0.0
  %706 = vmatpush1.msra.mxu0 0.0
  %707 = vmatprep.subr.mxu0 0.0
  %708 = vmatpush1.msra.mxu0 0.0
  %709 = vmatprep.subr.mxu0 0.0
  %710 = vmatpush1.msra.mxu0 0.0
  %711 = vmatprep.subr.mxu0 0.0
  %712 = vmatpush1.msra.mxu0 0.0
  %713 = vmatprep.subr.mxu0 0.0
  %714 = vmatpush1.msra.mxu0 0.0
  %715 = vmatprep.subr.mxu0 0.0
  %716 = vmatpush1.msra.mxu0 0.0
  %717 = vmatprep.subr.mxu0 0.0
  %718 = vmatpush1.msra.mxu0 0.0
  %719 = vmatprep.mubr.f32.mxu0 0.0
  %720 = vmatmul.mubr.f32.gmra.mrb[0].mxu0 %v582
  %v721 = vpop.f32.mrb[0].mxu0
  %v722 = vadd.f32 0.0, %v721
  %v723 = vpop.f32.mrb[0].mxu0
  %724 = vdwg.mxu0
  %v725 = vadd.f32 %v249, %v722
  %v726 = vxor.u32 %v725, 2147483648
  %v727 = vmul.f32 %v726, 1.442695
  %v728 = vpow.pop %v727
  %v729 = vadd.f32 %v728, 1.0
  %v730 = vrcp.pop %v729
  %v731 = vmul.f32 1.0, %v730
  %v732 = vtanh.pop %v725
  %v733 = vsel %vm286, %v732, %v731
  %v734 = vmul.f32 %v733, %v567
  %736 = vrot.lane.b32.xlu0 %v733, 64
  %v737 = vpop.permute.xlu0 %736
  %v739 = vmul.f32 %v733, %v737
  %741 = vrot.lane.b32.xlu0 %v739, 32
  %v742 = vpop.permute.xlu0 %741
  %v744 = vadd.f32 %v734, %v742
  %v745 = vtanh.pop %v744
  %747 = vrot.lane.b32.xlu0 %v745, 64
  %v748 = vpop.permute.xlu0 %747
  %v750 = vmul.f32 %v733, %v748
  %s751 = scalar_lea.vmem [#allocation2], 64
  %v752 = vld [vmem:[%s751] sm:$0xff]
  %v753 = vld [vmem:[%s751 + $0x8] sm:$0xff]
  %v754 = vld [vmem:[%s751 + $0x10] sm:$0xff]
  %v755 = vld [vmem:[%s751 + $0x18] sm:$0xff]
  %757 = vrot.lane.b32.xlu0 %v750, 32
  %v758 = vpop.permute.xlu0 %757
  %v759 = vsel %vm294, %v758, 0
  %761 = vmatprep.subr.mxu0 0.0
  %762 = vmatpush1.msra.mxu0 %v752
  %763 = vmatprep.subr.mxu0 0.0
  %764 = vmatpush1.msra.mxu0 %v753
  %765 = vmatprep.subr.mxu0 0.0
  %766 = vmatpush1.msra.mxu0 %v754
  %767 = vmatprep.subr.mxu0 0.0
  %768 = vmatpush1.msra.mxu0 %v755
  %769 = vmatprep.subr.mxu0 0.0
  %770 = vmatpush1.msra.mxu0 0.0
  %771 = vmatprep.subr.mxu0 0.0
  %772 = vmatpush1.msra.mxu0 0.0
  %773 = vmatprep.subr.mxu0 0.0
  %774 = vmatpush1.msra.mxu0 0.0
  %775 = vmatprep.subr.mxu0 0.0
  %776 = vmatpush1.msra.mxu0 0.0
  %777 = vmatprep.subr.mxu0 0.0
  %778 = vmatpush1.msra.mxu0 0.0
  %779 = vmatprep.subr.mxu0 0.0
  %780 = vmatpush1.msra.mxu0 0.0
  %781 = vmatprep.subr.mxu0 0.0
  %782 = vmatpush1.msra.mxu0 0.0
  %783 = vmatprep.subr.mxu0 0.0
  %784 = vmatpush1.msra.mxu0 0.0
  %785 = vmatprep.subr.mxu0 0.0
  %786 = vmatpush1.msra.mxu0 0.0
  %787 = vmatprep.subr.mxu0 0.0
  %788 = vmatpush1.msra.mxu0 0.0
  %789 = vmatprep.subr.mxu0 0.0
  %790 = vmatpush1.msra.mxu0 0.0
  %791 = vmatprep.subr.mxu0 0.0
  %792 = vmatpush1.msra.mxu0 0.0
  %793 = vmatprep.subr.mxu0 0.0
  %794 = vmatpush1.msra.mxu0 0.0
  %795 = vmatprep.subr.mxu0 0.0
  %796 = vmatpush1.msra.mxu0 0.0
  %797 = vmatprep.subr.mxu0 0.0
  %798 = vmatpush1.msra.mxu0 0.0
  %799 = vmatprep.subr.mxu0 0.0
  %800 = vmatpush1.msra.mxu0 0.0
  %801 = vmatprep.subr.mxu0 0.0
  %802 = vmatpush1.msra.mxu0 0.0
  %803 = vmatprep.subr.mxu0 0.0
  %804 = vmatpush1.msra.mxu0 0.0
  %805 = vmatprep.subr.mxu0 0.0
  %806 = vmatpush1.msra.mxu0 0.0
  %807 = vmatprep.subr.mxu0 0.0
  %808 = vmatpush1.msra.mxu0 0.0
  %809 = vmatprep.subr.mxu0 0.0
  %810 = vmatpush1.msra.mxu0 0.0
  %811 = vmatprep.subr.mxu0 0.0
  %812 = vmatpush1.msra.mxu0 0.0
  %813 = vmatprep.subr.mxu0 0.0
  %814 = vmatpush1.msra.mxu0 0.0
  %815 = vmatprep.subr.mxu0 0.0
  %816 = vmatpush1.msra.mxu0 0.0
  %817 = vmatprep.subr.mxu0 0.0
  %818 = vmatpush1.msra.mxu0 0.0
  %819 = vmatprep.subr.mxu0 0.0
  %820 = vmatpush1.msra.mxu0 0.0
  %821 = vmatprep.subr.mxu0 0.0
  %822 = vmatpush1.msra.mxu0 0.0
  %823 = vmatprep.subr.mxu0 0.0
  %824 = vmatpush1.msra.mxu0 0.0
  %825 = vmatprep.mubr.f32.mxu0 0.0
  %826 = vmatmul.mubr.f32.gmra.mrb[0].mxu0 %v759
  %v827 = vpop.f32.mrb[0].mxu0
  %v828 = vadd.f32 0.0, %v827
  %v829 = vpop.f32.mrb[0].mxu0
  %830 = vdwg.mxu0
  %v831 = vadd.f32 %v654, %v828
  %832 = vmatprep.subr.mxu0 0.0
  %833 = vmatpush1.msra.mxu0 %v277
  %834 = vmatprep.subr.mxu0 0.0
  %835 = vmatpush1.msra.mxu0 %v278
  %836 = vmatprep.subr.mxu0 0.0
  %837 = vmatpush1.msra.mxu0 %v279
  %838 = vmatprep.subr.mxu0 0.0
  %839 = vmatpush1.msra.mxu0 %v280
  %840 = vmatprep.subr.mxu0 0.0
  %841 = vmatpush1.msra.mxu0 0.0
  %842 = vmatprep.subr.mxu0 0.0
  %843 = vmatpush1.msra.mxu0 0.0
  %844 = vmatprep.subr.mxu0 0.0
  %845 = vmatpush1.msra.mxu0 0.0
  %846 = vmatprep.subr.mxu0 0.0
  %847 = vmatpush1.msra.mxu0 0.0
  %848 = vmatprep.subr.mxu0 0.0
  %849 = vmatpush1.msra.mxu0 0.0
  %850 = vmatprep.subr.mxu0 0.0
  %851 = vmatpush1.msra.mxu0 0.0
  %852 = vmatprep.subr.mxu0 0.0
  %853 = vmatpush1.msra.mxu0 0.0
  %854 = vmatprep.subr.mxu0 0.0
  %855 = vmatpush1.msra.mxu0 0.0
  %856 = vmatprep.subr.mxu0 0.0
  %857 = vmatpush1.msra.mxu0 0.0
  %858 = vmatprep.subr.mxu0 0.0
  %859 = vmatpush1.msra.mxu0 0.0
  %860 = vmatprep.subr.mxu0 0.0
  %861 = vmatpush1.msra.mxu0 0.0
  %862 = vmatprep.subr.mxu0 0.0
  %863 = vmatpush1.msra.mxu0 0.0
  %864 = vmatprep.subr.mxu0 0.0
  %865 = vmatpush1.msra.mxu0 0.0
  %866 = vmatprep.subr.mxu0 0.0
  %867 = vmatpush1.msra.mxu0 0.0
  %868 = vmatprep.subr.mxu0 0.0
  %869 = vmatpush1.msra.mxu0 0.0
  %870 = vmatprep.subr.mxu0 0.0
  %871 = vmatpush1.msra.mxu0 0.0
  %872 = vmatprep.subr.mxu0 0.0
  %873 = vmatpush1.msra.mxu0 0.0
  %874 = vmatprep.subr.mxu0 0.0
  %875 = vmatpush1.msra.mxu0 0.0
  %876 = vmatprep.subr.mxu0 0.0
  %877 = vmatpush1.msra.mxu0 0.0
  %878 = vmatprep.subr.mxu0 0.0
  %879 = vmatpush1.msra.mxu0 0.0
  %880 = vmatprep.subr.mxu0 0.0
  %881 = vmatpush1.msra.mxu0 0.0
  %882 = vmatprep.subr.mxu0 0.0
  %883 = vmatpush1.msra.mxu0 0.0
  %884 = vmatprep.subr.mxu0 0.0
  %885 = vmatpush1.msra.mxu0 0.0
  %886 = vmatprep.subr.mxu0 0.0
  %887 = vmatpush1.msra.mxu0 0.0
  %888 = vmatprep.subr.mxu0 0.0
  %889 = vmatpush1.msra.mxu0 0.0
  %890 = vmatprep.subr.mxu0 0.0
  %891 = vmatpush1.msra.mxu0 0.0
  %892 = vmatprep.subr.mxu0 0.0
  %893 = vmatpush1.msra.mxu0 0.0
  %894 = vmatprep.subr.mxu0 0.0
  %895 = vmatpush1.msra.mxu0 0.0
  %896 = vmatprep.mubr.f32.mxu0 0.0
  %897 = vmatmul.mubr.f32.gmra.mrb[0].mxu0 %v759
  %v898 = vpop.f32.mrb[0].mxu0
  %v899 = vadd.f32 0.0, %v898
  %v900 = vpop.f32.mrb[0].mxu0
  %901 = vdwg.mxu0
  %v902 = vadd.f32 %v254, %v899
  %v903 = vxor.u32 %v902, 2147483648
  %v904 = vmul.f32 %v903, 1.442695
  %v905 = vpow.pop %v904
  %v906 = vadd.f32 %v905, 1.0
  %v907 = vrcp.pop %v906
  %v908 = vmul.f32 1.0, %v907
  %v909 = vtanh.pop %v902
  %v910 = vsel %vm286, %v909, %v908
  %v911 = vmul.f32 %v910, %v744
  %913 = vrot.lane.b32.xlu0 %v910, 64
  %v914 = vpop.permute.xlu0 %913
  %v916 = vmul.f32 %v910, %v914
  %918 = vrot.lane.b32.xlu0 %v916, 32
  %v919 = vpop.permute.xlu0 %918
  %v921 = vadd.f32 %v911, %v919
  %v922 = vtanh.pop %v921
  %924 = vrot.lane.b32.xlu0 %v922, 64
  %v925 = vpop.permute.xlu0 %924
  %v927 = vmul.f32 %v910, %v925
  %s928 = scalar_lea.vmem [#allocation2], 96
  %v929 = vld [vmem:[%s928] sm:$0xff]
  %v930 = vld [vmem:[%s928 + $0x8] sm:$0xff]
  %v931 = vld [vmem:[%s928 + $0x10] sm:$0xff]
  %v932 = vld [vmem:[%s928 + $0x18] sm:$0xff]
  %934 = vrot.lane.b32.xlu0 %v927, 32
  %v935 = vpop.permute.xlu0 %934
  %v936 = vsel %vm294, %v935, 0
  %938 = vmatprep.subr.mxu0 0.0
  %939 = vmatpush1.msra.mxu0 %v929
  %940 = vmatprep.subr.mxu0 0.0
  %941 = vmatpush1.msra.mxu0 %v930
  %942 = vmatprep.subr.mxu0 0.0
  %943 = vmatpush1.msra.mxu0 %v931
  %944 = vmatprep.subr.mxu0 0.0
  %945 = vmatpush1.msra.mxu0 %v932
  %946 = vmatprep.subr.mxu0 0.0
  %947 = vmatpush1.msra.mxu0 0.0
  %948 = vmatprep.subr.mxu0 0.0
  %949 = vmatpush1.msra.mxu0 0.0
  %950 = vmatprep.subr.mxu0 0.0
  %951 = vmatpush1.msra.mxu0 0.0
  %952 = vmatprep.subr.mxu0 0.0
  %953 = vmatpush1.msra.mxu0 0.0
  %954 = vmatprep.subr.mxu0 0.0
  %955 = vmatpush1.msra.mxu0 0.0
  %956 = vmatprep.subr.mxu0 0.0
  %957 = vmatpush1.msra.mxu0 0.0
  %958 = vmatprep.subr.mxu0 0.0
  %959 = vmatpush1.msra.mxu0 0.0
  %960 = vmatprep.subr.mxu0 0.0
  %961 = vmatpush1.msra.mxu0 0.0
  %962 = vmatprep.subr.mxu0 0.0
  %963 = vmatpush1.msra.mxu0 0.0
  %964 = vmatprep.subr.mxu0 0.0
  %965 = vmatpush1.msra.mxu0 0.0
  %966 = vmatprep.subr.mxu0 0.0
  %967 = vmatpush1.msra.mxu0 0.0
  %968 = vmatprep.subr.mxu0 0.0
  %969 = vmatpush1.msra.mxu0 0.0
  %970 = vmatprep.subr.mxu0 0.0
  %971 = vmatpush1.msra.mxu0 0.0
  %972 = vmatprep.subr.mxu0 0.0
  %973 = vmatpush1.msra.mxu0 0.0
  %974 = vmatprep.subr.mxu0 0.0
  %975 = vmatpush1.msra.mxu0 0.0
  %976 = vmatprep.subr.mxu0 0.0
  %977 = vmatpush1.msra.mxu0 0.0
  %978 = vmatprep.subr.mxu0 0.0
  %979 = vmatpush1.msra.mxu0 0.0
  %980 = vmatprep.subr.mxu0 0.0
  %981 = vmatpush1.msra.mxu0 0.0
  %982 = vmatprep.subr.mxu0 0.0
  %983 = vmatpush1.msra.mxu0 0.0
  %984 = vmatprep.subr.mxu0 0.0
  %985 = vmatpush1.msra.mxu0 0.0
  %986 = vmatprep.subr.mxu0 0.0
  %987 = vmatpush1.msra.mxu0 0.0
  %988 = vmatprep.subr.mxu0 0.0
  %989 = vmatpush1.msra.mxu0 0.0
  %990 = vmatprep.subr.mxu0 0.0
  %991 = vmatpush1.msra.mxu0 0.0
  %992 = vmatprep.subr.mxu0 0.0
  %993 = vmatpush1.msra.mxu0 0.0
  %994 = vmatprep.subr.mxu0 0.0
  %995 = vmatpush1.msra.mxu0 0.0
  %996 = vmatprep.subr.mxu0 0.0
  %997 = vmatpush1.msra.mxu0 0.0
  %998 = vmatprep.subr.mxu0 0.0
  %999 = vmatpush1.msra.mxu0 0.0
  %1000 = vmatprep.subr.mxu0 0.0
  %1001 = vmatpush1.msra.mxu0 0.0
  %1002 = vmatprep.mubr.f32.mxu0 0.0
  %1003 = vmatmul.mubr.f32.gmra.mrb[0].mxu0 %v936
  %v1004 = vpop.f32.mrb[0].mxu0
  %v1005 = vadd.f32 0.0, %v1004
  %v1006 = vpop.f32.mrb[0].mxu0
  %1007 = vdwg.mxu0
  %v1008 = vadd.f32 %v831, %v1005
  %1009 = vmatprep.subr.mxu0 0.0
  %1010 = vmatpush1.msra.mxu0 %v277
  %1011 = vmatprep.subr.mxu0 0.0
  %1012 = vmatpush1.msra.mxu0 %v278
  %1013 = vmatprep.subr.mxu0 0.0
  %1014 = vmatpush1.msra.mxu0 %v279
  %1015 = vmatprep.subr.mxu0 0.0
  %1016 = vmatpush1.msra.mxu0 %v280
  %1017 = vmatprep.subr.mxu0 0.0
  %1018 = vmatpush1.msra.mxu0 0.0
  %1019 = vmatprep.subr.mxu0 0.0
  %1020 = vmatpush1.msra.mxu0 0.0
  %1021 = vmatprep.subr.mxu0 0.0
  %1022 = vmatpush1.msra.mxu0 0.0
  %1023 = vmatprep.subr.mxu0 0.0
  %1024 = vmatpush1.msra.mxu0 0.0
  %1025 = vmatprep.subr.mxu0 0.0
  %1026 = vmatpush1.msra.mxu0 0.0
  %1027 = vmatprep.subr.mxu0 0.0
  %1028 = vmatpush1.msra.mxu0 0.0
  %1029 = vmatprep.subr.mxu0 0.0
  %1030 = vmatpush1.msra.mxu0 0.0
  %1031 = vmatprep.subr.mxu0 0.0
  %1032 = vmatpush1.msra.mxu0 0.0
  %1033 = vmatprep.subr.mxu0 0.0
  %1034 = vmatpush1.msra.mxu0 0.0
  %1035 = vmatprep.subr.mxu0 0.0
  %1036 = vmatpush1.msra.mxu0 0.0
  %1037 = vmatprep.subr.mxu0 0.0
  %1038 = vmatpush1.msra.mxu0 0.0
  %1039 = vmatprep.subr.mxu0 0.0
  %1040 = vmatpush1.msra.mxu0 0.0
  %1041 = vmatprep.subr.mxu0 0.0
  %1042 = vmatpush1.msra.mxu0 0.0
  %1043 = vmatprep.subr.mxu0 0.0
  %1044 = vmatpush1.msra.mxu0 0.0
  %1045 = vmatprep.subr.mxu0 0.0
  %1046 = vmatpush1.msra.mxu0 0.0
  %1047 = vmatprep.subr.mxu0 0.0
  %1048 = vmatpush1.msra.mxu0 0.0
  %1049 = vmatprep.subr.mxu0 0.0
  %1050 = vmatpush1.msra.mxu0 0.0
  %1051 = vmatprep.subr.mxu0 0.0
  %1052 = vmatpush1.msra.mxu0 0.0
  %1053 = vmatprep.subr.mxu0 0.0
  %1054 = vmatpush1.msra.mxu0 0.0
  %1055 = vmatprep.subr.mxu0 0.0
  %1056 = vmatpush1.msra.mxu0 0.0
  %1057 = vmatprep.subr.mxu0 0.0
  %1058 = vmatpush1.msra.mxu0 0.0
  %1059 = vmatprep.subr.mxu0 0.0
  %1060 = vmatpush1.msra.mxu0 0.0
  %1061 = vmatprep.subr.mxu0 0.0
  %1062 = vmatpush1.msra.mxu0 0.0
  %1063 = vmatprep.subr.mxu0 0.0
  %1064 = vmatpush1.msra.mxu0 0.0
  %1065 = vmatprep.subr.mxu0 0.0
  %1066 = vmatpush1.msra.mxu0 0.0
  %1067 = vmatprep.subr.mxu0 0.0
  %1068 = vmatpush1.msra.mxu0 0.0
  %1069 = vmatprep.subr.mxu0 0.0
  %1070 = vmatpush1.msra.mxu0 0.0
  %1071 = vmatprep.subr.mxu0 0.0
  %1072 = vmatpush1.msra.mxu0 0.0
  %1073 = vmatprep.mubr.f32.mxu0 0.0
  %1074 = vmatmul.mubr.f32.gmra.mrb[0].mxu0 %v936
  %v1075 = vpop.f32.mrb[0].mxu0
  %v1076 = vadd.f32 0.0, %v1075
  %v1077 = vpop.f32.mrb[0].mxu0
  %1078 = vdwg.mxu0
  %v1079 = vadd.f32 %v259, %v1076
  %v1080 = vxor.u32 %v1079, 2147483648
  %v1081 = vmul.f32 %v1080, 1.442695
  %v1082 = vpow.pop %v1081
  %v1083 = vadd.f32 %v1082, 1.0
  %v1084 = vrcp.pop %v1083
  %v1085 = vmul.f32 1.0, %v1084
  %v1086 = vtanh.pop %v1079
  %v1087 = vsel %vm286, %v1086, %v1085
  %v1088 = vmul.f32 %v1087, %v921
  %1090 = vrot.lane.b32.xlu0 %v1087, 64
  %v1091 = vpop.permute.xlu0 %1090
  %v1093 = vmul.f32 %v1087, %v1091
  %1095 = vrot.lane.b32.xlu0 %v1093, 32
  %v1096 = vpop.permute.xlu0 %1095
  %v1098 = vadd.f32 %v1088, %v1096
  %v1099 = vtanh.pop %v1098
  %1101 = vrot.lane.b32.xlu0 %v1099, 64
  %v1102 = vpop.permute.xlu0 %1101
  %v1104 = vmul.f32 %v1087, %v1102
  %s1105 = scalar_lea.vmem [#allocation2], 128
  %v1106 = vld [vmem:[%s1105] sm:$0xff]
  %v1107 = vld [vmem:[%s1105 + $0x8] sm:$0xff]
  %v1108 = vld [vmem:[%s1105 + $0x10] sm:$0xff]
  %v1109 = vld [vmem:[%s1105 + $0x18] sm:$0xff]
  %1111 = vrot.lane.b32.xlu0 %v1104, 32
  %v1112 = vpop.permute.xlu0 %1111
  %v1113 = vsel %vm294, %v1112, 0
  %1115 = vmatprep.subr.mxu0 0.0
  %1116 = vmatpush1.msra.mxu0 %v1106
  %1117 = vmatprep.subr.mxu0 0.0
  %1118 = vmatpush1.msra.mxu0 %v1107
  %1119 = vmatprep.subr.mxu0 0.0
  %1120 = vmatpush1.msra.mxu0 %v1108
  %1121 = vmatprep.subr.mxu0 0.0
  %1122 = vmatpush1.msra.mxu0 %v1109
  %1123 = vmatprep.subr.mxu0 0.0
  %1124 = vmatpush1.msra.mxu0 0.0
  %1125 = vmatprep.subr.mxu0 0.0
  %1126 = vmatpush1.msra.mxu0 0.0
  %1127 = vmatprep.subr.mxu0 0.0
  %1128 = vmatpush1.msra.mxu0 0.0
  %1129 = vmatprep.subr.mxu0 0.0
  %1130 = vmatpush1.msra.mxu0 0.0
  %1131 = vmatprep.subr.mxu0 0.0
  %1132 = vmatpush1.msra.mxu0 0.0
  %1133 = vmatprep.subr.mxu0 0.0
  %1134 = vmatpush1.msra.mxu0 0.0
  %1135 = vmatprep.subr.mxu0 0.0
  %1136 = vmatpush1.msra.mxu0 0.0
  %1137 = vmatprep.subr.mxu0 0.0
  %1138 = vmatpush1.msra.mxu0 0.0
  %1139 = vmatprep.subr.mxu0 0.0
  %1140 = vmatpush1.msra.mxu0 0.0
  %1141 = vmatprep.subr.mxu0 0.0
  %1142 = vmatpush1.msra.mxu0 0.0
  %1143 = vmatprep.subr.mxu0 0.0
  %1144 = vmatpush1.msra.mxu0 0.0
  %1145 = vmatprep.subr.mxu0 0.0
  %1146 = vmatpush1.msra.mxu0 0.0
  %1147 = vmatprep.subr.mxu0 0.0
  %1148 = vmatpush1.msra.mxu0 0.0
  %1149 = vmatprep.subr.mxu0 0.0
  %1150 = vmatpush1.msra.mxu0 0.0
  %1151 = vmatprep.subr.mxu0 0.0
  %1152 = vmatpush1.msra.mxu0 0.0
  %1153 = vmatprep.subr.mxu0 0.0
  %1154 = vmatpush1.msra.mxu0 0.0
  %1155 = vmatprep.subr.mxu0 0.0
  %1156 = vmatpush1.msra.mxu0 0.0
  %1157 = vmatprep.subr.mxu0 0.0
  %1158 = vmatpush1.msra.mxu0 0.0
  %1159 = vmatprep.subr.mxu0 0.0
  %1160 = vmatpush1.msra.mxu0 0.0
  %1161 = vmatprep.subr.mxu0 0.0
  %1162 = vmatpush1.msra.mxu0 0.0
  %1163 = vmatprep.subr.mxu0 0.0
  %1164 = vmatpush1.msra.mxu0 0.0
  %1165 = vmatprep.subr.mxu0 0.0
  %1166 = vmatpush1.msra.mxu0 0.0
  %1167 = vmatprep.subr.mxu0 0.0
  %1168 = vmatpush1.msra.mxu0 0.0
  %1169 = vmatprep.subr.mxu0 0.0
  %1170 = vmatpush1.msra.mxu0 0.0
  %1171 = vmatprep.subr.mxu0 0.0
  %1172 = vmatpush1.msra.mxu0 0.0
  %1173 = vmatprep.subr.mxu0 0.0
  %1174 = vmatpush1.msra.mxu0 0.0
  %1175 = vmatprep.subr.mxu0 0.0
  %1176 = vmatpush1.msra.mxu0 0.0
  %1177 = vmatprep.subr.mxu0 0.0
  %1178 = vmatpush1.msra.mxu0 0.0
  %1179 = vmatprep.mubr.f32.mxu0 0.0
  %1180 = vmatmul.mubr.f32.gmra.mrb[0].mxu0 %v1113
  %v1181 = vpop.f32.mrb[0].mxu0
  %v1182 = vadd.f32 0.0, %v1181
  %v1183 = vpop.f32.mrb[0].mxu0
  %1184 = vdwg.mxu0
  %v1185 = vadd.f32 %v1008, %v1182
  %1186 = vmatprep.subr.mxu0 0.0
  %1187 = vmatpush1.msra.mxu0 %v277
  %1188 = vmatprep.subr.mxu0 0.0
  %1189 = vmatpush1.msra.mxu0 %v278
  %1190 = vmatprep.subr.mxu0 0.0
  %1191 = vmatpush1.msra.mxu0 %v279
  %1192 = vmatprep.subr.mxu0 0.0
  %1193 = vmatpush1.msra.mxu0 %v280
  %1194 = vmatprep.subr.mxu0 0.0
  %1195 = vmatpush1.msra.mxu0 0.0
  %1196 = vmatprep.subr.mxu0 0.0
  %1197 = vmatpush1.msra.mxu0 0.0
  %1198 = vmatprep.subr.mxu0 0.0
  %1199 = vmatpush1.msra.mxu0 0.0
  %1200 = vmatprep.subr.mxu0 0.0
  %1201 = vmatpush1.msra.mxu0 0.0
  %1202 = vmatprep.subr.mxu0 0.0
  %1203 = vmatpush1.msra.mxu0 0.0
  %1204 = vmatprep.subr.mxu0 0.0
  %1205 = vmatpush1.msra.mxu0 0.0
  %1206 = vmatprep.subr.mxu0 0.0
  %1207 = vmatpush1.msra.mxu0 0.0
  %1208 = vmatprep.subr.mxu0 0.0
  %1209 = vmatpush1.msra.mxu0 0.0
  %1210 = vmatprep.subr.mxu0 0.0
  %1211 = vmatpush1.msra.mxu0 0.0
  %1212 = vmatprep.subr.mxu0 0.0
  %1213 = vmatpush1.msra.mxu0 0.0
  %1214 = vmatprep.subr.mxu0 0.0
  %1215 = vmatpush1.msra.mxu0 0.0
  %1216 = vmatprep.subr.mxu0 0.0
  %1217 = vmatpush1.msra.mxu0 0.0
  %1218 = vmatprep.subr.mxu0 0.0
  %1219 = vmatpush1.msra.mxu0 0.0
  %1220 = vmatprep.subr.mxu0 0.0
  %1221 = vmatpush1.msra.mxu0 0.0
  %1222 = vmatprep.subr.mxu0 0.0
  %1223 = vmatpush1.msra.mxu0 0.0
  %1224 = vmatprep.subr.mxu0 0.0
  %1225 = vmatpush1.msra.mxu0 0.0
  %1226 = vmatprep.subr.mxu0 0.0
  %1227 = vmatpush1.msra.mxu0 0.0
  %1228 = vmatprep.subr.mxu0 0.0
  %1229 = vmatpush1.msra.mxu0 0.0
  %1230 = vmatprep.subr.mxu0 0.0
  %1231 = vmatpush1.msra.mxu0 0.0
  %1232 = vmatprep.subr.mxu0 0.0
  %1233 = vmatpush1.msra.mxu0 0.0
  %1234 = vmatprep.subr.mxu0 0.0
  %1235 = vmatpush1.msra.mxu0 0.0
  %1236 = vmatprep.subr.mxu0 0.0
  %1237 = vmatpush1.msra.mxu0 0.0
  %1238 = vmatprep.subr.mxu0 0.0
  %1239 = vmatpush1.msra.mxu0 0.0
  %1240 = vmatprep.subr.mxu0 0.0
  %1241 = vmatpush1.msra.mxu0 0.0
  %1242 = vmatprep.subr.mxu0 0.0
  %1243 = vmatpush1.msra.mxu0 0.0
  %1244 = vmatprep.subr.mxu0 0.0
  %1245 = vmatpush1.msra.mxu0 0.0
  %1246 = vmatprep.subr.mxu0 0.0
  %1247 = vmatpush1.msra.mxu0 0.0
  %1248 = vmatprep.subr.mxu0 0.0
  %1249 = vmatpush1.msra.mxu0 0.0
  %1250 = vmatprep.mubr.f32.mxu0 0.0
  %1251 = vmatmul.mubr.f32.gmra.mrb[0].mxu0 %v1113
  %v1252 = vpop.f32.mrb[0].mxu0
  %v1253 = vadd.f32 0.0, %v1252
  %v1254 = vpop.f32.mrb[0].mxu0
  %1255 = vdwg.mxu0
  %v1256 = vadd.f32 %v264, %v1253
  %v1257 = vxor.u32 %v1256, 2147483648
  %v1258 = vmul.f32 %v1257, 1.442695
  %v1259 = vpow.pop %v1258
  %v1260 = vadd.f32 %v1259, 1.0
  %v1261 = vrcp.pop %v1260
  %v1262 = vmul.f32 1.0, %v1261
  %v1263 = vtanh.pop %v1256
  %v1264 = vsel %vm286, %v1263, %v1262
  %v1265 = vmul.f32 %v1264, %v1098
  %1267 = vrot.lane.b32.xlu0 %v1264, 64
  %v1268 = vpop.permute.xlu0 %1267
  %v1270 = vmul.f32 %v1264, %v1268
  %1272 = vrot.lane.b32.xlu0 %v1270, 32
  %v1273 = vpop.permute.xlu0 %1272
  %v1275 = vadd.f32 %v1265, %v1273
  %v1276 = vtanh.pop %v1275
  %1278 = vrot.lane.b32.xlu0 %v1276, 64
  %v1279 = vpop.permute.xlu0 %1278
  %v1281 = vmul.f32 %v1264, %v1279
  %s1282 = scalar_lea.vmem [#allocation2], 160
  %v1283 = vld [vmem:[%s1282] sm:$0xff]
  %v1284 = vld [vmem:[%s1282 + $0x8] sm:$0xff]
  %v1285 = vld [vmem:[%s1282 + $0x10] sm:$0xff]
  %v1286 = vld [vmem:[%s1282 + $0x18] sm:$0xff]
  %1288 = vrot.lane.b32.xlu0 %v1281, 32
  %v1289 = vpop.permute.xlu0 %1288
  %v1290 = vsel %vm294, %v1289, 0
  %1292 = vmatprep.subr.mxu0 0.0
  %1293 = vmatpush1.msra.mxu0 %v1283
  %1294 = vmatprep.subr.mxu0 0.0
  %1295 = vmatpush1.msra.mxu0 %v1284
  %1296 = vmatprep.subr.mxu0 0.0
  %1297 = vmatpush1.msra.mxu0 %v1285
  %1298 = vmatprep.subr.mxu0 0.0
  %1299 = vmatpush1.msra.mxu0 %v1286
  %1300 = vmatprep.subr.mxu0 0.0
  %1301 = vmatpush1.msra.mxu0 0.0
  %1302 = vmatprep.subr.mxu0 0.0
  %1303 = vmatpush1.msra.mxu0 0.0
  %1304 = vmatprep.subr.mxu0 0.0
  %1305 = vmatpush1.msra.mxu0 0.0
  %1306 = vmatprep.subr.mxu0 0.0
  %1307 = vmatpush1.msra.mxu0 0.0
  %1308 = vmatprep.subr.mxu0 0.0
  %1309 = vmatpush1.msra.mxu0 0.0
  %1310 = vmatprep.subr.mxu0 0.0
  %1311 = vmatpush1.msra.mxu0 0.0
  %1312 = vmatprep.subr.mxu0 0.0
  %1313 = vmatpush1.msra.mxu0 0.0
  %1314 = vmatprep.subr.mxu0 0.0
  %1315 = vmatpush1.msra.mxu0 0.0
  %1316 = vmatprep.subr.mxu0 0.0
  %1317 = vmatpush1.msra.mxu0 0.0
  %1318 = vmatprep.subr.mxu0 0.0
  %1319 = vmatpush1.msra.mxu0 0.0
  %1320 = vmatprep.subr.mxu0 0.0
  %1321 = vmatpush1.msra.mxu0 0.0
  %1322 = vmatprep.subr.mxu0 0.0
  %1323 = vmatpush1.msra.mxu0 0.0
  %1324 = vmatprep.subr.mxu0 0.0
  %1325 = vmatpush1.msra.mxu0 0.0
  %1326 = vmatprep.subr.mxu0 0.0
  %1327 = vmatpush1.msra.mxu0 0.0
  %1328 = vmatprep.subr.mxu0 0.0
  %1329 = vmatpush1.msra.mxu0 0.0
  %1330 = vmatprep.subr.mxu0 0.0
  %1331 = vmatpush1.msra.mxu0 0.0
  %1332 = vmatprep.subr.mxu0 0.0
  %1333 = vmatpush1.msra.mxu0 0.0
  %1334 = vmatprep.subr.mxu0 0.0
  %1335 = vmatpush1.msra.mxu0 0.0
  %1336 = vmatprep.subr.mxu0 0.0
  %1337 = vmatpush1.msra.mxu0 0.0
  %1338 = vmatprep.subr.mxu0 0.0
  %1339 = vmatpush1.msra.mxu0 0.0
  %1340 = vmatprep.subr.mxu0 0.0
  %1341 = vmatpush1.msra.mxu0 0.0
  %1342 = vmatprep.subr.mxu0 0.0
  %1343 = vmatpush1.msra.mxu0 0.0
  %1344 = vmatprep.subr.mxu0 0.0
  %1345 = vmatpush1.msra.mxu0 0.0
  %1346 = vmatprep.subr.mxu0 0.0
  %1347 = vmatpush1.msra.mxu0 0.0
  %1348 = vmatprep.subr.mxu0 0.0
  %1349 = vmatpush1.msra.mxu0 0.0
  %1350 = vmatprep.subr.mxu0 0.0
  %1351 = vmatpush1.msra.mxu0 0.0
  %1352 = vmatprep.subr.mxu0 0.0
  %1353 = vmatpush1.msra.mxu0 0.0
  %1354 = vmatprep.subr.mxu0 0.0
  %1355 = vmatpush1.msra.mxu0 0.0
  %1356 = vmatprep.mubr.f32.mxu0 0.0
  %1357 = vmatmul.mubr.f32.gmra.mrb[0].mxu0 %v1290
  %v1358 = vpop.f32.mrb[0].mxu0
  %v1359 = vadd.f32 0.0, %v1358
  %v1360 = vpop.f32.mrb[0].mxu0
  %1361 = vdwg.mxu0
  %v1362 = vadd.f32 %v1185, %v1359
  %1363 = vmatprep.subr.mxu0 0.0
  %1364 = vmatpush1.msra.mxu0 %v277
  %1365 = vmatprep.subr.mxu0 0.0
  %1366 = vmatpush1.msra.mxu0 %v278
  %1367 = vmatprep.subr.mxu0 0.0
  %1368 = vmatpush1.msra.mxu0 %v279
  %1369 = vmatprep.subr.mxu0 0.0
  %1370 = vmatpush1.msra.mxu0 %v280
  %1371 = vmatprep.subr.mxu0 0.0
  %1372 = vmatpush1.msra.mxu0 0.0
  %1373 = vmatprep.subr.mxu0 0.0
  %1374 = vmatpush1.msra.mxu0 0.0
  %1375 = vmatprep.subr.mxu0 0.0
  %1376 = vmatpush1.msra.mxu0 0.0
  %1377 = vmatprep.subr.mxu0 0.0
  %1378 = vmatpush1.msra.mxu0 0.0
  %1379 = vmatprep.subr.mxu0 0.0
  %1380 = vmatpush1.msra.mxu0 0.0
  %1381 = vmatprep.subr.mxu0 0.0
  %1382 = vmatpush1.msra.mxu0 0.0
  %1383 = vmatprep.subr.mxu0 0.0
  %1384 = vmatpush1.msra.mxu0 0.0
  %1385 = vmatprep.subr.mxu0 0.0
  %1386 = vmatpush1.msra.mxu0 0.0
  %1387 = vmatprep.subr.mxu0 0.0
  %1388 = vmatpush1.msra.mxu0 0.0
  %1389 = vmatprep.subr.mxu0 0.0
  %1390 = vmatpush1.msra.mxu0 0.0
  %1391 = vmatprep.subr.mxu0 0.0
  %1392 = vmatpush1.msra.mxu0 0.0
  %1393 = vmatprep.subr.mxu0 0.0
  %1394 = vmatpush1.msra.mxu0 0.0
  %1395 = vmatprep.subr.mxu0 0.0
  %1396 = vmatpush1.msra.mxu0 0.0
  %1397 = vmatprep.subr.mxu0 0.0
  %1398 = vmatpush1.msra.mxu0 0.0
  %1399 = vmatprep.subr.mxu0 0.0
  %1400 = vmatpush1.msra.mxu0 0.0
  %1401 = vmatprep.subr.mxu0 0.0
  %1402 = vmatpush1.msra.mxu0 0.0
  %1403 = vmatprep.subr.mxu0 0.0
  %1404 = vmatpush1.msra.mxu0 0.0
  %1405 = vmatprep.subr.mxu0 0.0
  %1406 = vmatpush1.msra.mxu0 0.0
  %1407 = vmatprep.subr.mxu0 0.0
  %1408 = vmatpush1.msra.mxu0 0.0
  %1409 = vmatprep.subr.mxu0 0.0
  %1410 = vmatpush1.msra.mxu0 0.0
  %1411 = vmatprep.subr.mxu0 0.0
  %1412 = vmatpush1.msra.mxu0 0.0
  %1413 = vmatprep.subr.mxu0 0.0
  %1414 = vmatpush1.msra.mxu0 0.0
  %1415 = vmatprep.subr.mxu0 0.0
  %1416 = vmatpush1.msra.mxu0 0.0
  %1417 = vmatprep.subr.mxu0 0.0
  %1418 = vmatpush1.msra.mxu0 0.0
  %1419 = vmatprep.subr.mxu0 0.0
  %1420 = vmatpush1.msra.mxu0 0.0
  %1421 = vmatprep.subr.mxu0 0.0
  %1422 = vmatpush1.msra.mxu0 0.0
  %1423 = vmatprep.subr.mxu0 0.0
  %1424 = vmatpush1.msra.mxu0 0.0
  %1425 = vmatprep.subr.mxu0 0.0
  %1426 = vmatpush1.msra.mxu0 0.0
  %1427 = vmatprep.mubr.f32.mxu0 0.0
  %1428 = vmatmul.mubr.f32.gmra.mrb[0].mxu0 %v1290
  %v1429 = vpop.f32.mrb[0].mxu0
  %v1430 = vadd.f32 0.0, %v1429
  %v1431 = vpop.f32.mrb[0].mxu0
  %1432 = vdwg.mxu0
  %v1433 = vadd.f32 %v269, %v1430
  %v1434 = vxor.u32 %v1433, 2147483648
  %v1435 = vmul.f32 %v1434, 1.442695
  %v1436 = vpow.pop %v1435
  %v1437 = vadd.f32 %v1436, 1.0
  %v1438 = vrcp.pop %v1437
  %v1439 = vmul.f32 1.0, %v1438
  %v1440 = vtanh.pop %v1433
  %v1441 = vsel %vm286, %v1440, %v1439
  %v1442 = vmul.f32 %v1441, %v1275
  %1444 = vrot.lane.b32.xlu0 %v1441, 64
  %v1445 = vpop.permute.xlu0 %1444
  %v1447 = vmul.f32 %v1441, %v1445
  %1449 = vrot.lane.b32.xlu0 %v1447, 32
  %v1450 = vpop.permute.xlu0 %1449
  %v1452 = vadd.f32 %v1442, %v1450
  %v1453 = vtanh.pop %v1452
  %1455 = vrot.lane.b32.xlu0 %v1453, 64
  %v1456 = vpop.permute.xlu0 %1455
  %v1458 = vmul.f32 %v1441, %v1456
  %s1459 = scalar_lea.vmem [#allocation2], 192
  %v1460 = vld [vmem:[%s1459] sm:$0xff]
  %v1461 = vld [vmem:[%s1459 + $0x8] sm:$0xff]
  %v1462 = vld [vmem:[%s1459 + $0x10] sm:$0xff]
  %v1463 = vld [vmem:[%s1459 + $0x18] sm:$0xff]
  %1465 = vrot.lane.b32.xlu0 %v1458, 32
  %v1466 = vpop.permute.xlu0 %1465
  %v1467 = vsel %vm294, %v1466, 0
  %1469 = vmatprep.subr.mxu0 0.0
  %1470 = vmatpush1.msra.mxu0 %v1460
  %1471 = vmatprep.subr.mxu0 0.0
  %1472 = vmatpush1.msra.mxu0 %v1461
  %1473 = vmatprep.subr.mxu0 0.0
  %1474 = vmatpush1.msra.mxu0 %v1462
  %1475 = vmatprep.subr.mxu0 0.0
  %1476 = vmatpush1.msra.mxu0 %v1463
  %1477 = vmatprep.subr.mxu0 0.0
  %1478 = vmatpush1.msra.mxu0 0.0
  %1479 = vmatprep.subr.mxu0 0.0
  %1480 = vmatpush1.msra.mxu0 0.0
  %1481 = vmatprep.subr.mxu0 0.0
  %1482 = vmatpush1.msra.mxu0 0.0
  %1483 = vmatprep.subr.mxu0 0.0
  %1484 = vmatpush1.msra.mxu0 0.0
  %1485 = vmatprep.subr.mxu0 0.0
  %1486 = vmatpush1.msra.mxu0 0.0
  %1487 = vmatprep.subr.mxu0 0.0
  %1488 = vmatpush1.msra.mxu0 0.0
  %1489 = vmatprep.subr.mxu0 0.0
  %1490 = vmatpush1.msra.mxu0 0.0
  %1491 = vmatprep.subr.mxu0 0.0
  %1492 = vmatpush1.msra.mxu0 0.0
  %1493 = vmatprep.subr.mxu0 0.0
  %1494 = vmatpush1.msra.mxu0 0.0
  %1495 = vmatprep.subr.mxu0 0.0
  %1496 = vmatpush1.msra.mxu0 0.0
  %1497 = vmatprep.subr.mxu0 0.0
  %1498 = vmatpush1.msra.mxu0 0.0
  %1499 = vmatprep.subr.mxu0 0.0
  %1500 = vmatpush1.msra.mxu0 0.0
  %1501 = vmatprep.subr.mxu0 0.0
  %1502 = vmatpush1.msra.mxu0 0.0
  %1503 = vmatprep.subr.mxu0 0.0
  %1504 = vmatpush1.msra.mxu0 0.0
  %1505 = vmatprep.subr.mxu0 0.0
  %1506 = vmatpush1.msra.mxu0 0.0
  %1507 = vmatprep.subr.mxu0 0.0
  %1508 = vmatpush1.msra.mxu0 0.0
  %1509 = vmatprep.subr.mxu0 0.0
  %1510 = vmatpush1.msra.mxu0 0.0
  %1511 = vmatprep.subr.mxu0 0.0
  %1512 = vmatpush1.msra.mxu0 0.0
  %1513 = vmatprep.subr.mxu0 0.0
  %1514 = vmatpush1.msra.mxu0 0.0
  %1515 = vmatprep.subr.mxu0 0.0
  %1516 = vmatpush1.msra.mxu0 0.0
  %1517 = vmatprep.subr.mxu0 0.0
  %1518 = vmatpush1.msra.mxu0 0.0
  %1519 = vmatprep.subr.mxu0 0.0
  %1520 = vmatpush1.msra.mxu0 0.0
  %1521 = vmatprep.subr.mxu0 0.0
  %1522 = vmatpush1.msra.mxu0 0.0
  %1523 = vmatprep.subr.mxu0 0.0
  %1524 = vmatpush1.msra.mxu0 0.0
  %1525 = vmatprep.subr.mxu0 0.0
  %1526 = vmatpush1.msra.mxu0 0.0
  %1527 = vmatprep.subr.mxu0 0.0
  %1528 = vmatpush1.msra.mxu0 0.0
  %1529 = vmatprep.subr.mxu0 0.0
  %1530 = vmatpush1.msra.mxu0 0.0
  %1531 = vmatprep.subr.mxu0 0.0
  %1532 = vmatpush1.msra.mxu0 0.0
  %1533 = vmatprep.mubr.f32.mxu0 0.0
  %1534 = vmatmul.mubr.f32.gmra.mrb[0].mxu0 %v1467
  %v1535 = vpop.f32.mrb[0].mxu0
  %v1536 = vadd.f32 0.0, %v1535
  %v1537 = vpop.f32.mrb[0].mxu0
  %1538 = vdwg.mxu0
  %v1539 = vadd.f32 %v1362, %v1536
  %1540 = vmatprep.subr.mxu0 0.0
  %1541 = vmatpush1.msra.mxu0 %v277
  %1542 = vmatprep.subr.mxu0 0.0
  %1543 = vmatpush1.msra.mxu0 %v278
  %1544 = vmatprep.subr.mxu0 0.0
  %1545 = vmatpush1.msra.mxu0 %v279
  %1546 = vmatprep.subr.mxu0 0.0
  %1547 = vmatpush1.msra.mxu0 %v280
  %1548 = vmatprep.subr.mxu0 0.0
  %1549 = vmatpush1.msra.mxu0 0.0
  %1550 = vmatprep.subr.mxu0 0.0
  %1551 = vmatpush1.msra.mxu0 0.0
  %1552 = vmatprep.subr.mxu0 0.0
  %1553 = vmatpush1.msra.mxu0 0.0
  %1554 = vmatprep.subr.mxu0 0.0
  %1555 = vmatpush1.msra.mxu0 0.0
  %1556 = vmatprep.subr.mxu0 0.0
  %1557 = vmatpush1.msra.mxu0 0.0
  %1558 = vmatprep.subr.mxu0 0.0
  %1559 = vmatpush1.msra.mxu0 0.0
  %1560 = vmatprep.subr.mxu0 0.0
  %1561 = vmatpush1.msra.mxu0 0.0
  %1562 = vmatprep.subr.mxu0 0.0
  %1563 = vmatpush1.msra.mxu0 0.0
  %1564 = vmatprep.subr.mxu0 0.0
  %1565 = vmatpush1.msra.mxu0 0.0
  %1566 = vmatprep.subr.mxu0 0.0
  %1567 = vmatpush1.msra.mxu0 0.0
  %1568 = vmatprep.subr.mxu0 0.0
  %1569 = vmatpush1.msra.mxu0 0.0
  %1570 = vmatprep.subr.mxu0 0.0
  %1571 = vmatpush1.msra.mxu0 0.0
  %1572 = vmatprep.subr.mxu0 0.0
  %1573 = vmatpush1.msra.mxu0 0.0
  %1574 = vmatprep.subr.mxu0 0.0
  %1575 = vmatpush1.msra.mxu0 0.0
  %1576 = vmatprep.subr.mxu0 0.0
  %1577 = vmatpush1.msra.mxu0 0.0
  %1578 = vmatprep.subr.mxu0 0.0
  %1579 = vmatpush1.msra.mxu0 0.0
  %1580 = vmatprep.subr.mxu0 0.0
  %1581 = vmatpush1.msra.mxu0 0.0
  %1582 = vmatprep.subr.mxu0 0.0
  %1583 = vmatpush1.msra.mxu0 0.0
  %1584 = vmatprep.subr.mxu0 0.0
  %1585 = vmatpush1.msra.mxu0 0.0
  %1586 = vmatprep.subr.mxu0 0.0
  %1587 = vmatpush1.msra.mxu0 0.0
  %1588 = vmatprep.subr.mxu0 0.0
  %1589 = vmatpush1.msra.mxu0 0.0
  %1590 = vmatprep.subr.mxu0 0.0
  %1591 = vmatpush1.msra.mxu0 0.0
  %1592 = vmatprep.subr.mxu0 0.0
  %1593 = vmatpush1.msra.mxu0 0.0
  %1594 = vmatprep.subr.mxu0 0.0
  %1595 = vmatpush1.msra.mxu0 0.0
  %1596 = vmatprep.subr.mxu0 0.0
  %1597 = vmatpush1.msra.mxu0 0.0
  %1598 = vmatprep.subr.mxu0 0.0
  %1599 = vmatpush1.msra.mxu0 0.0
  %1600 = vmatprep.subr.mxu0 0.0
  %1601 = vmatpush1.msra.mxu0 0.0
  %1602 = vmatprep.subr.mxu0 0.0
  %1603 = vmatpush1.msra.mxu0 0.0
  %1604 = vmatprep.mubr.f32.mxu0 0.0
  %1605 = vmatmul.mubr.f32.gmra.mrb[0].mxu0 %v1467
  %v1606 = vpop.f32.mrb[0].mxu0
  %v1607 = vadd.f32 0.0, %v1606
  %v1608 = vpop.f32.mrb[0].mxu0
  %1609 = vdwg.mxu0
  %v1610 = vadd.f32 %v274, %v1607
  %v1611 = vxor.u32 %v1610, 2147483648
  %v1612 = vmul.f32 %v1611, 1.442695
  %v1613 = vpow.pop %v1612
  %v1614 = vadd.f32 %v1613, 1.0
  %v1615 = vrcp.pop %v1614
  %v1616 = vmul.f32 1.0, %v1615
  %v1617 = vtanh.pop %v1610
  %v1618 = vsel %vm286, %v1617, %v1616
  %v1619 = vmul.f32 %v1618, %v1452
  %1621 = vrot.lane.b32.xlu0 %v1618, 64
  %v1622 = vpop.permute.xlu0 %1621
  %v1624 = vmul.f32 %v1618, %v1622
  %1626 = vrot.lane.b32.xlu0 %v1624, 32
  %v1627 = vpop.permute.xlu0 %1626
  %v1629 = vadd.f32 %v1619, %v1627
  %v1630 = vtanh.pop %v1629
  %1632 = vrot.lane.b32.xlu0 %v1630, 64
  %v1633 = vpop.permute.xlu0 %1632
  %v1635 = vmul.f32 %v1618, %v1633
  %s1636 = scalar_lea.vmem [#allocation2], 224
  %v1637 = vld [vmem:[%s1636] sm:$0xff]
  %v1638 = vld [vmem:[%s1636 + $0x8] sm:$0xff]
  %v1639 = vld [vmem:[%s1636 + $0x10] sm:$0xff]
  %v1640 = vld [vmem:[%s1636 + $0x18] sm:$0xff]
  %1642 = vrot.lane.b32.xlu0 %v1635, 32
  %v1643 = vpop.permute.xlu0 %1642
  %v1644 = vsel %vm294, %v1643, 0
  %1646 = vmatprep.subr.mxu0 0.0
  %1647 = vmatpush1.msra.mxu0 %v1637
  %1648 = vmatprep.subr.mxu0 0.0
  %1649 = vmatpush1.msra.mxu0 %v1638
  %1650 = vmatprep.subr.mxu0 0.0
  %1651 = vmatpush1.msra.mxu0 %v1639
  %1652 = vmatprep.subr.mxu0 0.0
  %1653 = vmatpush1.msra.mxu0 %v1640
  %1654 = vmatprep.subr.mxu0 0.0
  %1655 = vmatpush1.msra.mxu0 0.0
  %1656 = vmatprep.subr.mxu0 0.0
  %1657 = vmatpush1.msra.mxu0 0.0
  %1658 = vmatprep.subr.mxu0 0.0
  %1659 = vmatpush1.msra.mxu0 0.0
  %1660 = vmatprep.subr.mxu0 0.0
  %1661 = vmatpush1.msra.mxu0 0.0
  %1662 = vmatprep.subr.mxu0 0.0
  %1663 = vmatpush1.msra.mxu0 0.0
  %1664 = vmatprep.subr.mxu0 0.0
  %1665 = vmatpush1.msra.mxu0 0.0
  %1666 = vmatprep.subr.mxu0 0.0
  %1667 = vmatpush1.msra.mxu0 0.0
  %1668 = vmatprep.subr.mxu0 0.0
  %1669 = vmatpush1.msra.mxu0 0.0
  %1670 = vmatprep.subr.mxu0 0.0
  %1671 = vmatpush1.msra.mxu0 0.0
  %1672 = vmatprep.subr.mxu0 0.0
  %1673 = vmatpush1.msra.mxu0 0.0
  %1674 = vmatprep.subr.mxu0 0.0
  %1675 = vmatpush1.msra.mxu0 0.0
  %1676 = vmatprep.subr.mxu0 0.0
  %1677 = vmatpush1.msra.mxu0 0.0
  %1678 = vmatprep.subr.mxu0 0.0
  %1679 = vmatpush1.msra.mxu0 0.0
  %1680 = vmatprep.subr.mxu0 0.0
  %1681 = vmatpush1.msra.mxu0 0.0
  %1682 = vmatprep.subr.mxu0 0.0
  %1683 = vmatpush1.msra.mxu0 0.0
  %1684 = vmatprep.subr.mxu0 0.0
  %1685 = vmatpush1.msra.mxu0 0.0
  %1686 = vmatprep.subr.mxu0 0.0
  %1687 = vmatpush1.msra.mxu0 0.0
  %1688 = vmatprep.subr.mxu0 0.0
  %1689 = vmatpush1.msra.mxu0 0.0
  %1690 = vmatprep.subr.mxu0 0.0
  %1691 = vmatpush1.msra.mxu0 0.0
  %1692 = vmatprep.subr.mxu0 0.0
  %1693 = vmatpush1.msra.mxu0 0.0
  %1694 = vmatprep.subr.mxu0 0.0
  %1695 = vmatpush1.msra.mxu0 0.0
  %1696 = vmatprep.subr.mxu0 0.0
  %1697 = vmatpush1.msra.mxu0 0.0
  %1698 = vmatprep.subr.mxu0 0.0
  %1699 = vmatpush1.msra.mxu0 0.0
  %1700 = vmatprep.subr.mxu0 0.0
  %1701 = vmatpush1.msra.mxu0 0.0
  %1702 = vmatprep.subr.mxu0 0.0
  %1703 = vmatpush1.msra.mxu0 0.0
  %1704 = vmatprep.subr.mxu0 0.0
  %1705 = vmatpush1.msra.mxu0 0.0
  %1706 = vmatprep.subr.mxu0 0.0
  %1707 = vmatpush1.msra.mxu0 0.0
  %1708 = vmatprep.subr.mxu0 0.0
  %1709 = vmatpush1.msra.mxu0 0.0
  %1710 = vmatprep.mubr.f32.mxu0 0.0
  %1711 = vmatmul.mubr.f32.gmra.mrb[0].mxu0 %v1644
  %v1712 = vpop.f32.mrb[0].mxu0
  %v1713 = vadd.f32 0.0, %v1712
  %v1714 = vpop.f32.mrb[0].mxu0
  %1715 = vdwg.mxu0
  %v1716 = vadd.f32 %v1539, %v1713
  %vm1717 = vcmask 7168
  %1718 = vst.msk [vmem:[%s6] sm:$0xff] %vm1717, %v1716
  // Predicated region
  $region56: #{tpu_custom_call.1} parent=0 // pred_check
    _
  $region57: #{tpu_custom_call.1} parent=0 // pred_check_branch
    %1720 = sbr.rel (0) target = $region59
  $region58: #{tpu_custom_call.1} parent=0 // pred_region
    _
  $region59: #{tpu_custom_call.1} parent=0 // pred_fallthru
    _
  // Predicated region
  $region60: #{tpu_custom_call.1} parent=0 // pred_check
    _
  $region61: #{tpu_custom_call.1} parent=0 // pred_check_branch
    %1722 = sbr.rel (0) target = $region63
  $region62: #{tpu_custom_call.1} parent=0 // pred_region
    _
  $region63: #{tpu_custom_call.1} parent=0 // pred_fallthru
    _
  %1723 = vsyncmov [#allocation3]
  %s1724 = vpop.sfrf %1723
  %p1725 = scmp.eq.s32.totalorder %s1724, 0
  %p1726 = pneg %p1725
  %1728 = shalt.err (%p1726)

</llo_original>
